<compile_context>
chip_gen: v6e
topology: v6e:2x2x1
jax: 0.10.0
libtpu: 0.0.40
codegen_flags: <defaults>
</compile_context>

<pallas_src>
import functools

import jax
import jax.numpy as jnp
from jax.experimental import pallas as pl
from jax.experimental.pallas import tpu as pltpu


_TN_TARGET = 8192               # lane columns per grid step (HBM-bound: big tiles)
_VMEM_LIMIT = 40 * 1024 * 1024  # safe on v5e (16 MiB scoped default) and v7x (64 MiB phys)


def _pick_tn(s, target=_TN_TARGET):
    """Largest 128-aligned divisor of s that is <= target (else s itself)."""
    if s <= target:
        return s
    t = (target // 128) * 128
    while t >= 128:
        if s % t == 0:
            return t
        t -= 128
    # TODO(synk): no 128-aligned divisor of S <= target; fall back to a single
    # full-extent block (correct, but uses more VMEM per step than ideal).
    return s


def _fold_tile(x, rows, lanes):
    """Sum an (R, N) f32 array into a (rows, lanes) partial-sum tile using only
    sublane/lane-aligned static slices and VPU adds (no cross-lane reductions
    on the hot loop; the final tiny reduce happens in XLA on (B, rows, lanes))."""
    r, n = x.shape
    acc_rows = x[:rows, :]
    for i in range(rows, r, rows):
        ri = min(rows, r - i)
        blk = x[i:i + ri, :]
        if ri < rows:
            blk = jnp.concatenate(
                [blk, jnp.zeros((rows - ri, n), x.dtype)], axis=0)
        acc_rows = acc_rows + blk
    acc = acc_rows[:, :lanes]
    for k in range(lanes, n, lanes):
        kw = min(lanes, n - k)
        blk = acc_rows[:, k:k + kw]
        if kw < lanes:
            blk = jnp.concatenate(
                [blk, jnp.zeros((rows, lanes - kw), x.dtype)], axis=1)
        acc = acc + blk
    return acc


# ----------------------------------------------------------------------------
# Fused per-level kernel: 1x1 conv (MXU) + ReLU + channel L2-normalize for
# BOTH image paths, per-level squared-diff accumulation, optional pixel-MSE
# accumulation (level 0), optional feature-map emission (all but last level).
# Grid = (batch ["parallel"], spatial tiles ["arbitrary"]).
# ----------------------------------------------------------------------------
def _level_kernel(xa_ref, xb_ref, w_ref, *out_refs,
                  emit_feat, emit_pix, acc_lanes, compute_dtype):
    k = 0
    fa_ref = fb_ref = pix_ref = None
    if emit_feat:
        fa_ref, fb_ref = out_refs[0], out_refs[1]
        k = 2
    lp_ref = out_refs[k]
    if emit_pix:
        pix_ref = out_refs[k + 1]

    j = pl.program_id(1)

    @pl.when(j == 0)
    def _init():
        lp_ref[...] = jnp.zeros_like(lp_ref)
        if emit_pix:
            pix_ref[...] = jnp.zeros_like(pix_ref)

    w = w_ref[...]
    xa = xa_ref[...]
    xb = xb_ref[...]

    # 1x1 conv (MXU, f32 accumulation) + ReLU for both paths in one step.
    ha = jnp.maximum(
        jnp.dot(w, xa.astype(compute_dtype),
                preferred_element_type=jnp.float32), 0.0)
    hb = jnp.maximum(
        jnp.dot(w, xb.astype(compute_dtype),
                preferred_element_type=jnp.float32), 0.0)

    # LPIPS-style per-location channel L2 normalization (f32 epilogue; VPU/EUP
    # friendly on v5e too since nothing elementwise runs in bf16).
    fa = ha * jax.lax.rsqrt(jnp.sum(ha * ha, axis=0, keepdims=True) + 1e-10)
    fb = hb * jax.lax.rsqrt(jnp.sum(hb * hb, axis=0, keepdims=True) + 1e-10)

    if emit_feat:
        fa_ref[...] = fa.astype(fa_ref.dtype)
        fb_ref[...] = fb.astype(fb_ref.dtype)

    # Fused per-level squared-difference reduction (resident f32 accumulator).
    d = fa - fb
    lp_ref[...] += _fold_tile(d * d, lp_ref.shape[0], acc_lanes)

    if emit_pix:
        # Pixel-space MSE term, fused so the raw f32 images are read once.
        dp = xa.astype(jnp.float32) - xb.astype(jnp.float32)
        pix_ref[...] += _fold_tile(dp * dp, pix_ref.shape[0], acc_lanes)


def _lpips_level(xa, xb, w, *, emit_feat, emit_pix,
                 tn_target=_TN_TARGET, feat_dtype=jnp.bfloat16):
    """Run one synthetic-LPIPS level on (B, C, S) activations for both paths.

    Returns (feat_a, feat_b)? + lpips_acc (B, 8, acc_lanes) + pix_acc?.
    """
    b, c, s = xa.shape
    cout = w.shape[0]
    tn = _pick_tn(s, tn_target)
    n_tiles = s // tn
    acc_lanes = min(128, tn)
    lp_rows = min(8, cout)

    out_shapes = []
    out_specs = []
    if emit_feat:
        feat_spec = pl.BlockSpec((None, cout, tn), lambda bi, j: (bi, 0, j))
        out_shapes += [jax.ShapeDtypeStruct((b, cout, s), feat_dtype)] * 2
        out_specs += [feat_spec, feat_spec]
    out_shapes.append(jax.ShapeDtypeStruct((b, lp_rows, acc_lanes), jnp.float32))
    out_specs.append(
        pl.BlockSpec((None, lp_rows, acc_lanes), lambda bi, j: (bi, 0, 0)))
    if emit_pix:
        out_shapes.append(jax.ShapeDtypeStruct((b, c, acc_lanes), jnp.float32))
        out_specs.append(
            pl.BlockSpec((None, c, acc_lanes), lambda bi, j: (bi, 0, 0)))

    in_item = jnp.dtype(xa.dtype).itemsize
    feat_item = jnp.dtype(feat_dtype).itemsize
    bytes_accessed = 2 * b * c * s * in_item + cout * c * feat_item
    if emit_feat:
        bytes_accessed += 2 * b * cout * s * feat_item
    cost = pl.CostEstimate(
        flops=int(4 * b * s * c * cout + 12 * b * s * cout),
        transcendentals=int(2 * b * s),
        bytes_accessed=int(bytes_accessed),
    )

    x_spec = pl.BlockSpec((None, c, tn), lambda bi, j: (bi, 0, j))
    kernel = functools.partial(
        _level_kernel, emit_feat=emit_feat, emit_pix=emit_pix,
        acc_lanes=acc_lanes, compute_dtype=feat_dtype)

    # TODO(synk): for B == 1 on v7x both TensorCores could be used by splitting
    # the spatial axis into a leading 2-way "parallel" axis with partial sums.
    return pl.pallas_call(
        kernel,
        out_shape=tuple(out_shapes),
        grid=(b, n_tiles),
        in_specs=[x_spec, x_spec,
                  pl.BlockSpec((cout, c), lambda bi, j: (0, 0))],  # weights resident
        out_specs=tuple(out_specs),
        compiler_params=pltpu.CompilerParams(
            dimension_semantics=("parallel", "arbitrary"),
            vmem_limit_bytes=_VMEM_LIMIT),
        cost_estimate=cost,
    )(xa, xb, w)


def _avg_pool_2x2(f, h, w):
    # TODO(synk): 2x2 average pool left to XLA; fusing a pooled output into the
    # level kernel (row-pair-aligned column tiles) would save one feature-map
    # HBM round trip per level.
    b, c, _ = f.shape
    f6 = f.reshape(b, c, h // 2, 2, w // 2, 2)
    return f6.mean(axis=(3, 5)).reshape(b, c, (h // 2) * (w // 2))


# ----------------------------------------------------------------------------
# Synthetic LPIPS weights: cascade of 1x1 convs, stored as (C_out, C_in).
# ----------------------------------------------------------------------------
def init_lpips_weights(key, in_ch=3, widths=(8, 16, 32)):
    ws = []
    c = in_ch
    for width in widths:
        key, sub = jax.random.split(key)
        ws.append(jax.random.normal(sub, (width, c), jnp.float32) / jnp.sqrt(c))
        c = width
    return ws


# ----------------------------------------------------------------------------
# ResolutionLoss.forward
# ----------------------------------------------------------------------------
def resolution_loss(fx, y, weights, alpha=0.1, compute_dtype=jnp.bfloat16,
                    tn_target=_TN_TARGET):
    if fx.shape != y.shape:
        # TODO(synk): general B*K-vs-B broadcasting of batch_mse not implemented;
        # ResolutionLoss is always called with matching shapes.
        raise ValueError("fx and y must have the same shape")
    b, c, h, w = fx.shape
    s = h * w

    # Free reshapes: NCHW already has channels on sublanes / spatial on lanes.
    xa = fx.reshape(b, c, s)
    xb = y.reshape(b, c, s)

    n_levels = len(weights)
    level_losses = []
    mse_loss = None
    cur_h, cur_w = h, w
    for i, wmat in enumerate(weights):
        cout = wmat.shape[0]
        last = i == n_levels - 1
        outs = _lpips_level(
            xa, xb, wmat.astype(compute_dtype),
            emit_feat=not last, emit_pix=(i == 0),
            tn_target=tn_target, feat_dtype=compute_dtype)
        k = 0
        if not last:
            fa, fb = outs[0], outs[1]
            k = 2
        lp_acc = outs[k]
        # batch_mse on the level features: sum((fa-fb)^2) / (cout * S_level)
        level_losses.append(lp_acc.sum(axis=(1, 2)) / (cout * cur_h * cur_w))
        if i == 0:
            # pixel-space batch_mse: sum((fx-y)^2) / (C * H * W)
            mse_loss = outs[k + 1].sum(axis=(1, 2)) / (c * s)
        if not last:
            xa = _avg_pool_2x2(fa, cur_h, cur_w)
            xb = _avg_pool_2x2(fb, cur_h, cur_w)
            cur_h //= 2
            cur_w //= 2

    # compute_loss_over_list(..., list_reduction='batch'): mean over levels
    lpips_loss = jnp.mean(jnp.stack(level_losses, axis=0), axis=0)
    result = lpips_loss + alpha * mse_loss
    return jnp.squeeze(result)


if __name__ == "__main__":
    key = jax.random.PRNGKey(0)
    k1, k2, k3 = jax.random.split(key, 3)
    B, C, H, W = 2, 3, 16, 16
    fx = jax.random.normal(k1, (B, C, H, W), jnp.float32)
    y = jax.random.normal(k2, (B, C, H, W), jnp.float32)
    weights = init_lpips_weights(k3, in_ch=C)

    loss_fn = jax.jit(functools.partial(resolution_loss, alpha=0.1))
    out = loss_fn(fx, y, weights)
    jax.block_until_ready(out)
    assert out.shape == (B,) and out.dtype == jnp.float32
    print("KERNEL_OK")
</pallas_src>

<mosaic_0001>
module attributes {stable_mosaic.version = 11 : i64} {
  func.func @_level_kernel(%arg0: i32, %arg1: i32, %arg2: memref<1x3x256xf32, #tpu.memory_space<vmem>>, %arg3: memref<1x3x256xf32, #tpu.memory_space<vmem>>, %arg4: memref<8x3xbf16, #tpu.memory_space<vmem>>, %arg5: memref<1x8x256xbf16, #tpu.memory_space<vmem>>, %arg6: memref<1x8x256xbf16, #tpu.memory_space<vmem>>, %arg7: memref<1x8x128xf32, #tpu.memory_space<vmem>>, %arg8: memref<1x3x128xf32, #tpu.memory_space<vmem>>) attributes {dimension_semantics = [#tpu.dimension_semantics<parallel>, #tpu.dimension_semantics<arbitrary>], iteration_bounds = array<i64: 2, 1>, scalar_prefetch = 0 : i64, scratch_operands = 0 : i64, tpu.core_type = #tpu.core_type<tc>, window_params = [{transform_indices = @transform_0, window_bounds = array<i64: 1, 3, 256>}, {transform_indices = @transform_1, window_bounds = array<i64: 1, 3, 256>}, {pipeline_mode = #tpu.pipeline_mode<synchronous>, transform_indices = @transform_2, window_bounds = array<i64: 8, 3>}, {transform_indices = @transform_3, window_bounds = array<i64: 1, 8, 256>}, {transform_indices = @transform_4, window_bounds = array<i64: 1, 8, 256>}, {transform_indices = @transform_5, window_bounds = array<i64: 1, 8, 128>}, {transform_indices = @transform_6, window_bounds = array<i64: 1, 3, 128>}]} {
    %c0_i32 = arith.constant 0 : i32
    %0 = arith.cmpi eq, %arg1, %c0_i32 : i32
    %1 = arith.extui %0 : i1 to i32
    %c0_i32_0 = arith.constant 0 : i32
    %2 = arith.cmpi ne, %1, %c0_i32_0 : i32
    scf.if %2 {
      %cst_33 = arith.constant 0.000000e+00 : f32
      %62 = vector.broadcast %cst_33 : f32 to vector<8x128xf32>
      %c0_34 = arith.constant 0 : index
      %c0_35 = arith.constant 0 : index
      %c0_36 = arith.constant 0 : index
      %63 = vector.load %arg7[%c0_34, %c0_35, %c0_36] : memref<1x8x128xf32, #tpu.memory_space<vmem>>, vector<1x8x128xf32>
      %64 = vector.shape_cast %63 : vector<1x8x128xf32> to vector<8x128xf32>
      %65 = vector.shape_cast %62 : vector<8x128xf32> to vector<1x8x128xf32>
      tpu.vector_store %arg7[%c0_34, %c0_35, %c0_36], %65 {strides = array<i32>} : memref<1x8x128xf32, #tpu.memory_space<vmem>>, vector<1x8x128xf32>,
      %cst_37 = arith.constant 0.000000e+00 : f32
      %66 = vector.broadcast %cst_37 : f32 to vector<3x128xf32>
      %c0_38 = arith.constant 0 : index
      %c0_39 = arith.constant 0 : index
      %c0_40 = arith.constant 0 : index
      %67 = vector.load %arg8[%c0_38, %c0_39, %c0_40] : memref<1x3x128xf32, #tpu.memory_space<vmem>>, vector<1x3x128xf32>
      %68 = vector.shape_cast %67 : vector<1x3x128xf32> to vector<3x128xf32>
      %69 = vector.shape_cast %66 : vector<3x128xf32> to vector<1x3x128xf32>
      tpu.vector_store %arg8[%c0_38, %c0_39, %c0_40], %69 {strides = array<i32>} : memref<1x3x128xf32, #tpu.memory_space<vmem>>, vector<1x3x128xf32>,
    } else {
    }
    %c0 = arith.constant 0 : index
    %c0_1 = arith.constant 0 : index
    %3 = vector.load %arg4[%c0, %c0_1] : memref<8x3xbf16, #tpu.memory_space<vmem>>, vector<8x3xbf16>
    %c0_2 = arith.constant 0 : index
    %c0_3 = arith.constant 0 : index
    %c0_4 = arith.constant 0 : index
    %4 = vector.load %arg2[%c0_2, %c0_3, %c0_4] : memref<1x3x256xf32, #tpu.memory_space<vmem>>, vector<1x3x256xf32>
    %5 = vector.shape_cast %4 : vector<1x3x256xf32> to vector<3x256xf32>
    %c0_5 = arith.constant 0 : index
    %c0_6 = arith.constant 0 : index
    %c0_7 = arith.constant 0 : index
    %6 = vector.load %arg3[%c0_5, %c0_6, %c0_7] : memref<1x3x256xf32, #tpu.memory_space<vmem>>, vector<1x3x256xf32>
    %7 = vector.shape_cast %6 : vector<1x3x256xf32> to vector<3x256xf32>
    %8 = arith.truncf %5 : vector<3x256xf32> to vector<3x256xbf16>
    %cst = arith.constant dense<0.000000e+00> : vector<8x256xf32>
    %9 = tpu.matmul %3, %8, %cst {dimension_numbers = #tpu.dot_dimension_numbers<[1], [0], [0], [1], [0, 0, 1, 1], [], []>} : vector<8x3xbf16>, vector<3x256xbf16>, vector<8x256xf32> -> vector<8x256xf32>
    %cst_8 = arith.constant 0.000000e+00 : f32
    %10 = vector.broadcast %cst_8 : f32 to vector<8x256xf32>
    %11 = arith.maximumf %9, %10 : vector<8x256xf32>
    %12 = arith.truncf %7 : vector<3x256xf32> to vector<3x256xbf16>
    %cst_9 = arith.constant dense<0.000000e+00> : vector<8x256xf32>
    %13 = tpu.matmul %3, %12, %cst_9 {dimension_numbers = #tpu.dot_dimension_numbers<[1], [0], [0], [1], [0, 0, 1, 1], [], []>} : vector<8x3xbf16>, vector<3x256xbf16>, vector<8x256xf32> -> vector<8x256xf32>
    %cst_10 = arith.constant 0.000000e+00 : f32
    %14 = vector.broadcast %cst_10 : f32 to vector<8x256xf32>
    %15 = arith.maximumf %13, %14 : vector<8x256xf32>
    %16 = arith.mulf %11, %11 : vector<8x256xf32>
    %cst_11 = arith.constant dense<0.000000e+00> : vector<256xf32>
    %17 = vector.multi_reduction <add>, %16, %cst_11 [0] : vector<8x256xf32> to vector<256xf32>
    %18 = vector.shape_cast %17 : vector<256xf32> to vector<1x256xf32>
    %cst_12 = arith.constant 1.000000e-10 : f32
    %19 = vector.broadcast %cst_12 : f32 to vector<1x256xf32>
    %20 = arith.addf %18, %19 : vector<1x256xf32>
    %21 = math.rsqrt %20 : vector<1x256xf32>
    %22 = vector.broadcast %21 : vector<1x256xf32> to vector<8x256xf32>
    %23 = arith.mulf %11, %22 : vector<8x256xf32>
    %24 = arith.mulf %15, %15 : vector<8x256xf32>
    %cst_13 = arith.constant dense<0.000000e+00> : vector<256xf32>
    %25 = vector.multi_reduction <add>, %24, %cst_13 [0] : vector<8x256xf32> to vector<256xf32>
    %26 = vector.shape_cast %25 : vector<256xf32> to vector<1x256xf32>
    %cst_14 = arith.constant 1.000000e-10 : f32
    %27 = vector.broadcast %cst_14 : f32 to vector<1x256xf32>
    %28 = arith.addf %26, %27 : vector<1x256xf32>
    %29 = math.rsqrt %28 : vector<1x256xf32>
    %30 = vector.broadcast %29 : vector<1x256xf32> to vector<8x256xf32>
    %31 = arith.mulf %15, %30 : vector<8x256xf32>
    %32 = arith.truncf %23 : vector<8x256xf32> to vector<8x256xbf16>
    %c0_15 = arith.constant 0 : index
    %c0_16 = arith.constant 0 : index
    %c0_17 = arith.constant 0 : index
    %33 = vector.load %arg5[%c0_15, %c0_16, %c0_17] : memref<1x8x256xbf16, #tpu.memory_space<vmem>>, vector<1x8x256xbf16>
    %34 = vector.shape_cast %33 : vector<1x8x256xbf16> to vector<8x256xbf16>
    %35 = vector.shape_cast %32 : vector<8x256xbf16> to vector<1x8x256xbf16>
    tpu.vector_store %arg5[%c0_15, %c0_16, %c0_17], %35 {strides = array<i32>} : memref<1x8x256xbf16, #tpu.memory_space<vmem>>, vector<1x8x256xbf16>,
    %36 = arith.truncf %31 : vector<8x256xf32> to vector<8x256xbf16>
    %c0_18 = arith.constant 0 : index
    %c0_19 = arith.constant 0 : index
    %c0_20 = arith.constant 0 : index
    %37 = vector.load %arg6[%c0_18, %c0_19, %c0_20] : memref<1x8x256xbf16, #tpu.memory_space<vmem>>, vector<1x8x256xbf16>
    %38 = vector.shape_cast %37 : vector<1x8x256xbf16> to vector<8x256xbf16>
    %39 = vector.shape_cast %36 : vector<8x256xbf16> to vector<1x8x256xbf16>
    tpu.vector_store %arg6[%c0_18, %c0_19, %c0_20], %39 {strides = array<i32>} : memref<1x8x256xbf16, #tpu.memory_space<vmem>>, vector<1x8x256xbf16>,
    %40 = arith.subf %23, %31 : vector<8x256xf32>
    %c0_21 = arith.constant 0 : index
    %c0_22 = arith.constant 0 : index
    %c0_23 = arith.constant 0 : index
    %41 = vector.load %arg7[%c0_21, %c0_22, %c0_23] : memref<1x8x128xf32, #tpu.memory_space<vmem>>, vector<1x8x128xf32>
    %42 = vector.shape_cast %41 : vector<1x8x128xf32> to vector<8x128xf32>
    %43 = arith.mulf %40, %40 : vector<8x256xf32>
    %44 = vector.extract_strided_slice %43 {offsets = [0, 0], sizes = [8, 128], strides = [1, 1]} : vector<8x256xf32> to vector<8x128xf32>
    %45 = vector.extract_strided_slice %43 {offsets = [0, 128], sizes = [8, 128], strides = [1, 1]} : vector<8x256xf32> to vector<8x128xf32>
    %46 = arith.addf %44, %45 : vector<8x128xf32>
    %47 = arith.addf %42, %46 : vector<8x128xf32>
    %c0_24 = arith.constant 0 : index
    %c0_25 = arith.constant 0 : index
    %c0_26 = arith.constant 0 : index
    %48 = vector.load %arg7[%c0_24, %c0_25, %c0_26] : memref<1x8x128xf32, #tpu.memory_space<vmem>>, vector<1x8x128xf32>
    %49 = vector.shape_cast %48 : vector<1x8x128xf32> to vector<8x128xf32>
    %50 = vector.shape_cast %47 : vector<8x128xf32> to vector<1x8x128xf32>
    tpu.vector_store %arg7[%c0_24, %c0_25, %c0_26], %50 {strides = array<i32>} : memref<1x8x128xf32, #tpu.memory_space<vmem>>, vector<1x8x128xf32>,
    %51 = arith.subf %5, %7 : vector<3x256xf32>
    %c0_27 = arith.constant 0 : index
    %c0_28 = arith.constant 0 : index
    %c0_29 = arith.constant 0 : index
    %52 = vector.load %arg8[%c0_27, %c0_28, %c0_29] : memref<1x3x128xf32, #tpu.memory_space<vmem>>, vector<1x3x128xf32>
    %53 = vector.shape_cast %52 : vector<1x3x128xf32> to vector<3x128xf32>
    %54 = arith.mulf %51, %51 : vector<3x256xf32>
    %55 = vector.extract_strided_slice %54 {offsets = [0, 0], sizes = [3, 128], strides = [1, 1]} : vector<3x256xf32> to vector<3x128xf32>
    %56 = vector.extract_strided_slice %54 {offsets = [0, 128], sizes = [3, 128], strides = [1, 1]} : vector<3x256xf32> to vector<3x128xf32>
    %57 = arith.addf %55, %56 : vector<3x128xf32>
    %58 = arith.addf %53, %57 : vector<3x128xf32>
    %c0_30 = arith.constant 0 : index
    %c0_31 = arith.constant 0 : index
    %c0_32 = arith.constant 0 : index
    %59 = vector.load %arg8[%c0_30, %c0_31, %c0_32] : memref<1x3x128xf32, #tpu.memory_space<vmem>>, vector<1x3x128xf32>
    %60 = vector.shape_cast %59 : vector<1x3x128xf32> to vector<3x128xf32>
    %61 = vector.shape_cast %58 : vector<3x128xf32> to vector<1x3x128xf32>
    tpu.vector_store %arg8[%c0_30, %c0_31, %c0_32], %61 {strides = array<i32>} : memref<1x3x128xf32, #tpu.memory_space<vmem>>, vector<1x3x128xf32>,
    return
  }
  func.func @transform_0(%arg0: i32, %arg1: i32) -> (i32, i32, i32) {
    %c0_i32 = arith.constant 0 : i32
    %c0_i32_0 = arith.constant 0 : i32
    return %arg0, %c0_i32, %arg1 : i32, i32, i32
  }
  func.func @transform_1(%arg0: i32, %arg1: i32) -> (i32, i32, i32) {
    %c0_i32 = arith.constant 0 : i32
    %c0_i32_0 = arith.constant 0 : i32
    return %arg0, %c0_i32, %arg1 : i32, i32, i32
  }
  func.func @transform_2(%arg0: i32, %arg1: i32) -> (i32, i32) {
    %c0_i32 = arith.constant 0 : i32
    %c0_i32_0 = arith.constant 0 : i32
    %c0_i32_1 = arith.constant 0 : i32
    return %c0_i32, %c0_i32_0 : i32, i32
  }
  func.func @transform_3(%arg0: i32, %arg1: i32) -> (i32, i32, i32) {
    %c0_i32 = arith.constant 0 : i32
    %c0_i32_0 = arith.constant 0 : i32
    return %arg0, %c0_i32, %arg1 : i32, i32, i32
  }
  func.func @transform_4(%arg0: i32, %arg1: i32) -> (i32, i32, i32) {
    %c0_i32 = arith.constant 0 : i32
    %c0_i32_0 = arith.constant 0 : i32
    return %arg0, %c0_i32, %arg1 : i32, i32, i32
  }
  func.func @transform_5(%arg0: i32, %arg1: i32) -> (i32, i32, i32) {
    %c0_i32 = arith.constant 0 : i32
    %c0_i32_0 = arith.constant 0 : i32
    %c0_i32_1 = arith.constant 0 : i32
    return %arg0, %c0_i32, %c0_i32_0 : i32, i32, i32
  }
  func.func @transform_6(%arg0: i32, %arg1: i32) -> (i32, i32, i32) {
    %c0_i32 = arith.constant 0 : i32
    %c0_i32_0 = arith.constant 0 : i32
    %c0_i32_1 = arith.constant 0 : i32
    return %arg0, %c0_i32, %c0_i32_0 : i32, i32, i32
  }
}

module attributes {stable_mosaic.version = 11 : i64} {
  func.func @_level_kernel(%arg0: i32, %arg1: i32, %arg2: memref<1x8x64xbf16, #tpu.memory_space<vmem>>, %arg3: memref<1x8x64xbf16, #tpu.memory_space<vmem>>, %arg4: memref<16x8xbf16, #tpu.memory_space<vmem>>, %arg5: memref<1x16x64xbf16, #tpu.memory_space<vmem>>, %arg6: memref<1x16x64xbf16, #tpu.memory_space<vmem>>, %arg7: memref<1x8x64xf32, #tpu.memory_space<vmem>>) attributes {dimension_semantics = [#tpu.dimension_semantics<parallel>, #tpu.dimension_semantics<arbitrary>], iteration_bounds = array<i64: 2, 1>, scalar_prefetch = 0 : i64, scratch_operands = 0 : i64, tpu.core_type = #tpu.core_type<tc>, window_params = [{transform_indices = @transform_0, window_bounds = array<i64: 1, 8, 64>}, {transform_indices = @transform_1, window_bounds = array<i64: 1, 8, 64>}, {pipeline_mode = #tpu.pipeline_mode<synchronous>, transform_indices = @transform_2, window_bounds = array<i64: 16, 8>}, {transform_indices = @transform_3, window_bounds = array<i64: 1, 16, 64>}, {transform_indices = @transform_4, window_bounds = array<i64: 1, 16, 64>}, {transform_indices = @transform_5, window_bounds = array<i64: 1, 8, 64>}]} {
    %c0_i32 = arith.constant 0 : i32
    %0 = arith.cmpi eq, %arg1, %c0_i32 : i32
    %1 = arith.extui %0 : i1 to i32
    %c0_i32_0 = arith.constant 0 : i32
    %2 = arith.cmpi ne, %1, %c0_i32_0 : i32
    scf.if %2 {
      %cst_27 = arith.constant 0.000000e+00 : f32
      %49 = vector.broadcast %cst_27 : f32 to vector<8x64xf32>
      %c0_28 = arith.constant 0 : index
      %c0_29 = arith.constant 0 : index
      %c0_30 = arith.constant 0 : index
      %50 = vector.load %arg7[%c0_28, %c0_29, %c0_30] : memref<1x8x64xf32, #tpu.memory_space<vmem>>, vector<1x8x64xf32>
      %51 = vector.shape_cast %50 : vector<1x8x64xf32> to vector<8x64xf32>
      %52 = vector.shape_cast %49 : vector<8x64xf32> to vector<1x8x64xf32>
      tpu.vector_store %arg7[%c0_28, %c0_29, %c0_30], %52 {strides = array<i32>} : memref<1x8x64xf32, #tpu.memory_space<vmem>>, vector<1x8x64xf32>,
    } else {
    }
    %c0 = arith.constant 0 : index
    %c0_1 = arith.constant 0 : index
    %3 = vector.load %arg4[%c0, %c0_1] : memref<16x8xbf16, #tpu.memory_space<vmem>>, vector<16x8xbf16>
    %c0_2 = arith.constant 0 : index
    %c0_3 = arith.constant 0 : index
    %c0_4 = arith.constant 0 : index
    %4 = vector.load %arg2[%c0_2, %c0_3, %c0_4] : memref<1x8x64xbf16, #tpu.memory_space<vmem>>, vector<1x8x64xbf16>
    %5 = vector.shape_cast %4 : vector<1x8x64xbf16> to vector<8x64xbf16>
    %c0_5 = arith.constant 0 : index
    %c0_6 = arith.constant 0 : index
    %c0_7 = arith.constant 0 : index
    %6 = vector.load %arg3[%c0_5, %c0_6, %c0_7] : memref<1x8x64xbf16, #tpu.memory_space<vmem>>, vector<1x8x64xbf16>
    %7 = vector.shape_cast %6 : vector<1x8x64xbf16> to vector<8x64xbf16>
    %cst = arith.constant dense<0.000000e+00> : vector<16x64xf32>
    %8 = tpu.matmul %3, %5, %cst {dimension_numbers = #tpu.dot_dimension_numbers<[1], [0], [0], [1], [0, 0, 1, 1], [], []>} : vector<16x8xbf16>, vector<8x64xbf16>, vector<16x64xf32> -> vector<16x64xf32>
    %cst_8 = arith.constant 0.000000e+00 : f32
    %9 = vector.broadcast %cst_8 : f32 to vector<16x64xf32>
    %10 = arith.maximumf %8, %9 : vector<16x64xf32>
    %cst_9 = arith.constant dense<0.000000e+00> : vector<16x64xf32>
    %11 = tpu.matmul %3, %7, %cst_9 {dimension_numbers = #tpu.dot_dimension_numbers<[1], [0], [0], [1], [0, 0, 1, 1], [], []>} : vector<16x8xbf16>, vector<8x64xbf16>, vector<16x64xf32> -> vector<16x64xf32>
    %cst_10 = arith.constant 0.000000e+00 : f32
    %12 = vector.broadcast %cst_10 : f32 to vector<16x64xf32>
    %13 = arith.maximumf %11, %12 : vector<16x64xf32>
    %14 = arith.mulf %10, %10 : vector<16x64xf32>
    %cst_11 = arith.constant dense<0.000000e+00> : vector<64xf32>
    %15 = vector.multi_reduction <add>, %14, %cst_11 [0] : vector<16x64xf32> to vector<64xf32>
    %16 = vector.shape_cast %15 : vector<64xf32> to vector<1x64xf32>
    %cst_12 = arith.constant 1.000000e-10 : f32
    %17 = vector.broadcast %cst_12 : f32 to vector<1x64xf32>
    %18 = arith.addf %16, %17 : vector<1x64xf32>
    %19 = math.rsqrt %18 : vector<1x64xf32>
    %20 = vector.broadcast %19 : vector<1x64xf32> to vector<16x64xf32>
    %21 = arith.mulf %10, %20 : vector<16x64xf32>
    %22 = arith.mulf %13, %13 : vector<16x64xf32>
    %cst_13 = arith.constant dense<0.000000e+00> : vector<64xf32>
    %23 = vector.multi_reduction <add>, %22, %cst_13 [0] : vector<16x64xf32> to vector<64xf32>
    %24 = vector.shape_cast %23 : vector<64xf32> to vector<1x64xf32>
    %cst_14 = arith.constant 1.000000e-10 : f32
    %25 = vector.broadcast %cst_14 : f32 to vector<1x64xf32>
    %26 = arith.addf %24, %25 : vector<1x64xf32>
    %27 = math.rsqrt %26 : vector<1x64xf32>
    %28 = vector.broadcast %27 : vector<1x64xf32> to vector<16x64xf32>
    %29 = arith.mulf %13, %28 : vector<16x64xf32>
    %30 = arith.truncf %21 : vector<16x64xf32> to vector<16x64xbf16>
    %c0_15 = arith.constant 0 : index
    %c0_16 = arith.constant 0 : index
    %c0_17 = arith.constant 0 : index
    %31 = vector.load %arg5[%c0_15, %c0_16, %c0_17] : memref<1x16x64xbf16, #tpu.memory_space<vmem>>, vector<1x16x64xbf16>
    %32 = vector.shape_cast %31 : vector<1x16x64xbf16> to vector<16x64xbf16>
    %33 = vector.shape_cast %30 : vector<16x64xbf16> to vector<1x16x64xbf16>
    tpu.vector_store %arg5[%c0_15, %c0_16, %c0_17], %33 {strides = array<i32>} : memref<1x16x64xbf16, #tpu.memory_space<vmem>>, vector<1x16x64xbf16>,
    %34 = arith.truncf %29 : vector<16x64xf32> to vector<16x64xbf16>
    %c0_18 = arith.constant 0 : index
    %c0_19 = arith.constant 0 : index
    %c0_20 = arith.constant 0 : index
    %35 = vector.load %arg6[%c0_18, %c0_19, %c0_20] : memref<1x16x64xbf16, #tpu.memory_space<vmem>>, vector<1x16x64xbf16>
    %36 = vector.shape_cast %35 : vector<1x16x64xbf16> to vector<16x64xbf16>
    %37 = vector.shape_cast %34 : vector<16x64xbf16> to vector<1x16x64xbf16>
    tpu.vector_store %arg6[%c0_18, %c0_19, %c0_20], %37 {strides = array<i32>} : memref<1x16x64xbf16, #tpu.memory_space<vmem>>, vector<1x16x64xbf16>,
    %38 = arith.subf %21, %29 : vector<16x64xf32>
    %c0_21 = arith.constant 0 : index
    %c0_22 = arith.constant 0 : index
    %c0_23 = arith.constant 0 : index
    %39 = vector.load %arg7[%c0_21, %c0_22, %c0_23] : memref<1x8x64xf32, #tpu.memory_space<vmem>>, vector<1x8x64xf32>
    %40 = vector.shape_cast %39 : vector<1x8x64xf32> to vector<8x64xf32>
    %41 = arith.mulf %38, %38 : vector<16x64xf32>
    %42 = vector.extract_strided_slice %41 {offsets = [0, 0], sizes = [8, 64], strides = [1, 1]} : vector<16x64xf32> to vector<8x64xf32>
    %43 = vector.extract_strided_slice %41 {offsets = [8, 0], sizes = [8, 64], strides = [1, 1]} : vector<16x64xf32> to vector<8x64xf32>
    %44 = arith.addf %42, %43 : vector<8x64xf32>
    %45 = arith.addf %40, %44 : vector<8x64xf32>
    %c0_24 = arith.constant 0 : index
    %c0_25 = arith.constant 0 : index
    %c0_26 = arith.constant 0 : index
    %46 = vector.load %arg7[%c0_24, %c0_25, %c0_26] : memref<1x8x64xf32, #tpu.memory_space<vmem>>, vector<1x8x64xf32>
    %47 = vector.shape_cast %46 : vector<1x8x64xf32> to vector<8x64xf32>
    %48 = vector.shape_cast %45 : vector<8x64xf32> to vector<1x8x64xf32>
    tpu.vector_store %arg7[%c0_24, %c0_25, %c0_26], %48 {strides = array<i32>} : memref<1x8x64xf32, #tpu.memory_space<vmem>>, vector<1x8x64xf32>,
    return
  }
  func.func @transform_0(%arg0: i32, %arg1: i32) -> (i32, i32, i32) {
    %c0_i32 = arith.constant 0 : i32
    %c0_i32_0 = arith.constant 0 : i32
    return %arg0, %c0_i32, %arg1 : i32, i32, i32
  }
  func.func @transform_1(%arg0: i32, %arg1: i32) -> (i32, i32, i32) {
    %c0_i32 = arith.constant 0 : i32
    %c0_i32_0 = arith.constant 0 : i32
    return %arg0, %c0_i32, %arg1 : i32, i32, i32
  }
  func.func @transform_2(%arg0: i32, %arg1: i32) -> (i32, i32) {
    %c0_i32 = arith.constant 0 : i32
    %c0_i32_0 = arith.constant 0 : i32
    %c0_i32_1 = arith.constant 0 : i32
    return %c0_i32, %c0_i32_0 : i32, i32
  }
  func.func @transform_3(%arg0: i32, %arg1: i32) -> (i32, i32, i32) {
    %c0_i32 = arith.constant 0 : i32
    %c0_i32_0 = arith.constant 0 : i32
    return %arg0, %c0_i32, %arg1 : i32, i32, i32
  }
  func.func @transform_4(%arg0: i32, %arg1: i32) -> (i32, i32, i32) {
    %c0_i32 = arith.constant 0 : i32
    %c0_i32_0 = arith.constant 0 : i32
    return %arg0, %c0_i32, %arg1 : i32, i32, i32
  }
  func.func @transform_5(%arg0: i32, %arg1: i32) -> (i32, i32, i32) {
    %c0_i32 = arith.constant 0 : i32
    %c0_i32_0 = arith.constant 0 : i32
    %c0_i32_1 = arith.constant 0 : i32
    return %arg0, %c0_i32, %c0_i32_0 : i32, i32, i32
  }
}

module attributes {stable_mosaic.version = 11 : i64} {
  func.func @_level_kernel(%arg0: i32, %arg1: i32, %arg2: memref<1x16x16xbf16, #tpu.memory_space<vmem>>, %arg3: memref<1x16x16xbf16, #tpu.memory_space<vmem>>, %arg4: memref<32x16xbf16, #tpu.memory_space<vmem>>, %arg5: memref<1x8x16xf32, #tpu.memory_space<vmem>>) attributes {dimension_semantics = [#tpu.dimension_semantics<parallel>, #tpu.dimension_semantics<arbitrary>], iteration_bounds = array<i64: 2, 1>, scalar_prefetch = 0 : i64, scratch_operands = 0 : i64, tpu.core_type = #tpu.core_type<tc>, window_params = [{transform_indices = @transform_0, window_bounds = array<i64: 1, 16, 16>}, {transform_indices = @transform_1, window_bounds = array<i64: 1, 16, 16>}, {pipeline_mode = #tpu.pipeline_mode<synchronous>, transform_indices = @transform_2, window_bounds = array<i64: 32, 16>}, {transform_indices = @transform_3, window_bounds = array<i64: 1, 8, 16>}]} {
    %c0_i32 = arith.constant 0 : i32
    %0 = arith.cmpi eq, %arg1, %c0_i32 : i32
    %1 = arith.extui %0 : i1 to i32
    %c0_i32_0 = arith.constant 0 : i32
    %2 = arith.cmpi ne, %1, %c0_i32_0 : i32
    scf.if %2 {
      %cst_21 = arith.constant 0.000000e+00 : f32
      %45 = vector.broadcast %cst_21 : f32 to vector<8x16xf32>
      %c0_22 = arith.constant 0 : index
      %c0_23 = arith.constant 0 : index
      %c0_24 = arith.constant 0 : index
      %46 = vector.load %arg5[%c0_22, %c0_23, %c0_24] : memref<1x8x16xf32, #tpu.memory_space<vmem>>, vector<1x8x16xf32>
      %47 = vector.shape_cast %46 : vector<1x8x16xf32> to vector<8x16xf32>
      %48 = vector.shape_cast %45 : vector<8x16xf32> to vector<1x8x16xf32>
      tpu.vector_store %arg5[%c0_22, %c0_23, %c0_24], %48 {strides = array<i32>} : memref<1x8x16xf32, #tpu.memory_space<vmem>>, vector<1x8x16xf32>,
    } else {
    }
    %c0 = arith.constant 0 : index
    %c0_1 = arith.constant 0 : index
    %3 = vector.load %arg4[%c0, %c0_1] : memref<32x16xbf16, #tpu.memory_space<vmem>>, vector<32x16xbf16>
    %c0_2 = arith.constant 0 : index
    %c0_3 = arith.constant 0 : index
    %c0_4 = arith.constant 0 : index
    %4 = vector.load %arg2[%c0_2, %c0_3, %c0_4] : memref<1x16x16xbf16, #tpu.memory_space<vmem>>, vector<1x16x16xbf16>
    %5 = vector.shape_cast %4 : vector<1x16x16xbf16> to vector<16x16xbf16>
    %c0_5 = arith.constant 0 : index
    %c0_6 = arith.constant 0 : index
    %c0_7 = arith.constant 0 : index
    %6 = vector.load %arg3[%c0_5, %c0_6, %c0_7] : memref<1x16x16xbf16, #tpu.memory_space<vmem>>, vector<1x16x16xbf16>
    %7 = vector.shape_cast %6 : vector<1x16x16xbf16> to vector<16x16xbf16>
    %cst = arith.constant dense<0.000000e+00> : vector<32x16xf32>
    %8 = tpu.matmul %3, %5, %cst {dimension_numbers = #tpu.dot_dimension_numbers<[1], [0], [0], [1], [0, 0, 1, 1], [], []>} : vector<32x16xbf16>, vector<16x16xbf16>, vector<32x16xf32> -> vector<32x16xf32>
    %cst_8 = arith.constant 0.000000e+00 : f32
    %9 = vector.broadcast %cst_8 : f32 to vector<32x16xf32>
    %10 = arith.maximumf %8, %9 : vector<32x16xf32>
    %cst_9 = arith.constant dense<0.000000e+00> : vector<32x16xf32>
    %11 = tpu.matmul %3, %7, %cst_9 {dimension_numbers = #tpu.dot_dimension_numbers<[1], [0], [0], [1], [0, 0, 1, 1], [], []>} : vector<32x16xbf16>, vector<16x16xbf16>, vector<32x16xf32> -> vector<32x16xf32>
    %cst_10 = arith.constant 0.000000e+00 : f32
    %12 = vector.broadcast %cst_10 : f32 to vector<32x16xf32>
    %13 = arith.maximumf %11, %12 : vector<32x16xf32>
    %14 = arith.mulf %10, %10 : vector<32x16xf32>
    %cst_11 = arith.constant dense<0.000000e+00> : vector<16xf32>
    %15 = vector.multi_reduction <add>, %14, %cst_11 [0] : vector<32x16xf32> to vector<16xf32>
    %16 = vector.shape_cast %15 : vector<16xf32> to vector<1x16xf32>
    %cst_12 = arith.constant 1.000000e-10 : f32
    %17 = vector.broadcast %cst_12 : f32 to vector<1x16xf32>
    %18 = arith.addf %16, %17 : vector<1x16xf32>
    %19 = math.rsqrt %18 : vector<1x16xf32>
    %20 = vector.broadcast %19 : vector<1x16xf32> to vector<32x16xf32>
    %21 = arith.mulf %10, %20 : vector<32x16xf32>
    %22 = arith.mulf %13, %13 : vector<32x16xf32>
    %cst_13 = arith.constant dense<0.000000e+00> : vector<16xf32>
    %23 = vector.multi_reduction <add>, %22, %cst_13 [0] : vector<32x16xf32> to vector<16xf32>
    %24 = vector.shape_cast %23 : vector<16xf32> to vector<1x16xf32>
    %cst_14 = arith.constant 1.000000e-10 : f32
    %25 = vector.broadcast %cst_14 : f32 to vector<1x16xf32>
    %26 = arith.addf %24, %25 : vector<1x16xf32>
    %27 = math.rsqrt %26 : vector<1x16xf32>
    %28 = vector.broadcast %27 : vector<1x16xf32> to vector<32x16xf32>
    %29 = arith.mulf %13, %28 : vector<32x16xf32>
    %30 = arith.subf %21, %29 : vector<32x16xf32>
    %c0_15 = arith.constant 0 : index
    %c0_16 = arith.constant 0 : index
    %c0_17 = arith.constant 0 : index
    %31 = vector.load %arg5[%c0_15, %c0_16, %c0_17] : memref<1x8x16xf32, #tpu.memory_space<vmem>>, vector<1x8x16xf32>
    %32 = vector.shape_cast %31 : vector<1x8x16xf32> to vector<8x16xf32>
    %33 = arith.mulf %30, %30 : vector<32x16xf32>
    %34 = vector.extract_strided_slice %33 {offsets = [0, 0], sizes = [8, 16], strides = [1, 1]} : vector<32x16xf32> to vector<8x16xf32>
    %35 = vector.extract_strided_slice %33 {offsets = [8, 0], sizes = [8, 16], strides = [1, 1]} : vector<32x16xf32> to vector<8x16xf32>
    %36 = arith.addf %34, %35 : vector<8x16xf32>
    %37 = vector.extract_strided_slice %33 {offsets = [16, 0], sizes = [8, 16], strides = [1, 1]} : vector<32x16xf32> to vector<8x16xf32>
    %38 = arith.addf %36, %37 : vector<8x16xf32>
    %39 = vector.extract_strided_slice %33 {offsets = [24, 0], sizes = [8, 16], strides = [1, 1]} : vector<32x16xf32> to vector<8x16xf32>
    %40 = arith.addf %38, %39 : vector<8x16xf32>
    %41 = arith.addf %32, %40 : vector<8x16xf32>
    %c0_18 = arith.constant 0 : index
    %c0_19 = arith.constant 0 : index
    %c0_20 = arith.constant 0 : index
    %42 = vector.load %arg5[%c0_18, %c0_19, %c0_20] : memref<1x8x16xf32, #tpu.memory_space<vmem>>, vector<1x8x16xf32>
    %43 = vector.shape_cast %42 : vector<1x8x16xf32> to vector<8x16xf32>
    %44 = vector.shape_cast %41 : vector<8x16xf32> to vector<1x8x16xf32>
    tpu.vector_store %arg5[%c0_18, %c0_19, %c0_20], %44 {strides = array<i32>} : memref<1x8x16xf32, #tpu.memory_space<vmem>>, vector<1x8x16xf32>,
    return
  }
  func.func @transform_0(%arg0: i32, %arg1: i32) -> (i32, i32, i32) {
    %c0_i32 = arith.constant 0 : i32
    %c0_i32_0 = arith.constant 0 : i32
    return %arg0, %c0_i32, %arg1 : i32, i32, i32
  }
  func.func @transform_1(%arg0: i32, %arg1: i32) -> (i32, i32, i32) {
    %c0_i32 = arith.constant 0 : i32
    %c0_i32_0 = arith.constant 0 : i32
    return %arg0, %c0_i32, %arg1 : i32, i32, i32
  }
  func.func @transform_2(%arg0: i32, %arg1: i32) -> (i32, i32) {
    %c0_i32 = arith.constant 0 : i32
    %c0_i32_0 = arith.constant 0 : i32
    %c0_i32_1 = arith.constant 0 : i32
    return %c0_i32, %c0_i32_0 : i32, i32
  }
  func.func @transform_3(%arg0: i32, %arg1: i32) -> (i32, i32, i32) {
    %c0_i32 = arith.constant 0 : i32
    %c0_i32_0 = arith.constant 0 : i32
    %c0_i32_1 = arith.constant 0 : i32
    return %arg0, %c0_i32, %c0_i32_0 : i32, i32, i32
  }
}

</mosaic_0001>

<llo_original>
// kernel: resolution_loss.4
$region0: #{resolution_loss.4}
  #allocation0 [shape = 'u32[]', space=smem, size = 0x4, offset = 0x4, fixed_abs, tag = 'smem constant byte address 0x4 - core index']
  #allocation1 [shape = 'u32[144,128]{1,0:T(1,128)}', space=vmem, size = 0x12000, scoped, tag = 'internal scratch']
  %s0 = inlined_call_operand.vmem [shape: bf16[2,8,64], index: 0, kind: input, shape index: {}]
  %s1 = inlined_call_operand.vmem [shape: bf16[2,8,64], index: 1, kind: input, shape index: {}]
  %s2 = inlined_call_operand.vmem [shape: bf16[16,8], index: 2, kind: input, shape index: {}]
  %s3 = inlined_call_operand.vmem [shape: bf16[2,16,64], index: 3, kind: output, shape index: {0}]
  %s4 = inlined_call_operand.vmem [shape: bf16[2,16,64], index: 4, kind: output, shape index: {1}]
  %s5 = inlined_call_operand.vmem [shape: f32[2,8,64], index: 5, kind: output, shape index: {2}]
  %6 = xla_tuple %s3, %s4, %s5
  %s7 = sld [smem:[#allocation0]]
  $region65: #{resolution_loss.4} parent=0
    _
  %s9 = ssub.s32 1, %s7
  %s10 = scalar_select 0, %s9, %s7
  loop: start=0, step=1, limit=4
  $region2: #{resolution_loss.4} parent=0 // loop_pre_header
    _
  $region3: #{resolution_loss.4} parent=0 // loop_header
    %s12 = sphi 0, %s16
    %p13 = scmp.ge.s32.totalorder %s12, 4
    %s19 = sphi 0, %s31
    %s20 = sphi 0, %s27
    %s21 = sphi 0, %s19
    %s22 = sphi 0, %s20
    %s23 = sphi 0, %s21
    %s24 = sphi 0, %s22
    %s36 = sphi 0, %s38
    %s39 = sphi 0, %s36
    %s40 = sphi 0, %s39
    %s56 = sphi 0, %s40
    %s64 = sphi 0, %s66
    %s67 = sphi 0, %s64
    %s68 = sphi 0, %s67
    %s84 = sphi 0, %s68
    %s88 = sphi 0, %s88
    %s90 = sphi 0, %s88
    %s91 = sphi 0, %s90
    %s105 = sphi 0, %s91
    %s113 = sphi 0, %s115
    %s116 = sphi 0, %s113
    %s117 = sphi 0, %s116
    %s133 = sphi 0, %s117
    %s141 = sphi 0, %s143
    %s144 = sphi 0, %s141
    %s145 = sphi 0, %s144
    %s161 = sphi 0, %s145
    %s167 = sphi 0, %s169
    %s170 = sphi 0, %s167
    %s171 = sphi 0, %s170
    %s187 = sphi 0, %s171
  $region4: #{resolution_loss.4} parent=0 // loop_header_branch
    %15 = sbr.rel (%p13) target = $region8
  $region5: #{resolution_loss.4} parent=0 // loop_body
    %s17 = ssub.s32 %s12, 1
    %s18 = ssub.s32 %s12, 2
    %s25 = sadd.s32 1, %s20
    %p26 = scmp.ge.s32.totalorder %s25, 1
    %s27 = scalar_select %p26, 0, %s25
    %s28 = sadd.s32 1, %s19
    %s29 = scalar_select %p26, %s28, %s19
    %p30 = scmp.ge.s32.totalorder %s29, 2
    %s31 = scalar_select %p30, 0, %s29
    %s32 = ssub.s32 %s19, %s31
    %s33 = ssub.s32 %s20, %s27
    %s34 = sor.u32 %s32, %s33
    %p35 = scmp.eq.s32.totalorder %s34, 0
    %s37 = sadd.s32 %s36, 1
    %s38 = scalar_select %p35, %s36, %s37
    %p41 = pneg %p35
    %p42 = scmp.eq.s32.totalorder %s12, 1
    %p43 = por %p41, %p42
    %p44 = scmp.ne.s32.totalorder %s36, %s39
    %p45 = scmp.eq.s32.totalorder %s12, 0
    %p46 = por %p44, %p45
    %p47 = scmp.ne.s32.totalorder %s36, %s39
    %p48 = scmp.eq.s32.totalorder %s17, 1
    %p49 = por %p47, %p48
    %p50 = scmp.ne.s32.totalorder %s39, %s40
    %p51 = scmp.eq.s32.totalorder %s17, 0
    %p52 = por %p50, %p51
    %p53 = scmp.ne.s32.totalorder %s39, %s40
    %p54 = scmp.eq.s32.totalorder %s18, 1
    %p55 = por %p53, %p54
    %p57 = scmp.ne.s32.totalorder %s40, %s56
    %p58 = scmp.eq.s32.totalorder %s18, 0
    %p59 = por %p57, %p58
    %s60 = ssub.s32 %s19, %s31
    %s61 = ssub.s32 %s20, %s27
    %s62 = sor.u32 %s60, %s61
    %p63 = scmp.eq.s32.totalorder %s62, 0
    %s65 = sadd.s32 %s64, 1
    %s66 = scalar_select %p63, %s64, %s65
    %p69 = pneg %p63
    %p70 = scmp.eq.s32.totalorder %s12, 1
    %p71 = por %p69, %p70
    %p72 = scmp.ne.s32.totalorder %s64, %s67
    %p73 = scmp.eq.s32.totalorder %s12, 0
    %p74 = por %p72, %p73
    %p75 = scmp.ne.s32.totalorder %s64, %s67
    %p76 = scmp.eq.s32.totalorder %s17, 1
    %p77 = por %p75, %p76
    %p78 = scmp.ne.s32.totalorder %s67, %s68
    %p79 = scmp.eq.s32.totalorder %s17, 0
    %p80 = por %p78, %p79
    %p81 = scmp.ne.s32.totalorder %s67, %s68
    %p82 = scmp.eq.s32.totalorder %s18, 1
    %p83 = por %p81, %p82
    %p85 = scmp.ne.s32.totalorder %s68, %s84
    %p86 = scmp.eq.s32.totalorder %s18, 0
    %p87 = por %p85, %p86
    %s89 = sadd.s32 %s88, 1
    %p92 = scmp.eq.s32.totalorder %s12, 1
    %p93 = scmp.ne.s32.totalorder %s88, %s90
    %p94 = scmp.eq.s32.totalorder %s12, 0
    %p95 = por %p93, %p94
    %p96 = scmp.ne.s32.totalorder %s88, %s90
    %p97 = scmp.eq.s32.totalorder %s17, 1
    %p98 = por %p96, %p97
    %p99 = scmp.ne.s32.totalorder %s90, %s91
    %p100 = scmp.eq.s32.totalorder %s17, 0
    %p101 = por %p99, %p100
    %p102 = scmp.ne.s32.totalorder %s90, %s91
    %p103 = scmp.eq.s32.totalorder %s18, 1
    %p104 = por %p102, %p103
    %p106 = scmp.ne.s32.totalorder %s91, %s105
    %p107 = scmp.eq.s32.totalorder %s18, 0
    %p108 = por %p106, %p107
    %s109 = ssub.s32 %s19, %s31
    %s110 = ssub.s32 %s20, %s27
    %s111 = sor.u32 %s109, %s110
    %p112 = scmp.eq.s32.totalorder %s111, 0
    %s114 = sadd.s32 %s113, 1
    %s115 = scalar_select %p112, %s113, %s114
    %p118 = pneg %p112
    %p119 = scmp.eq.s32.totalorder %s12, 1
    %p120 = por %p118, %p119
    %p121 = scmp.ne.s32.totalorder %s113, %s116
    %p122 = scmp.eq.s32.totalorder %s12, 0
    %p123 = por %p121, %p122
    %p124 = scmp.ne.s32.totalorder %s113, %s116
    %p125 = scmp.eq.s32.totalorder %s17, 1
    %p126 = por %p124, %p125
    %p127 = scmp.ne.s32.totalorder %s116, %s117
    %p128 = scmp.eq.s32.totalorder %s17, 0
    %p129 = por %p127, %p128
    %p130 = scmp.ne.s32.totalorder %s116, %s117
    %p131 = scmp.eq.s32.totalorder %s18, 1
    %p132 = por %p130, %p131
    %p134 = scmp.ne.s32.totalorder %s117, %s133
    %p135 = scmp.eq.s32.totalorder %s18, 0
    %p136 = por %p134, %p135
    %s137 = ssub.s32 %s19, %s31
    %s138 = ssub.s32 %s20, %s27
    %s139 = sor.u32 %s137, %s138
    %p140 = scmp.eq.s32.totalorder %s139, 0
    %s142 = sadd.s32 %s141, 1
    %s143 = scalar_select %p140, %s141, %s142
    %p146 = pneg %p140
    %p147 = scmp.eq.s32.totalorder %s12, 1
    %p148 = por %p146, %p147
    %p149 = scmp.ne.s32.totalorder %s141, %s144
    %p150 = scmp.eq.s32.totalorder %s12, 0
    %p151 = por %p149, %p150
    %p152 = scmp.ne.s32.totalorder %s141, %s144
    %p153 = scmp.eq.s32.totalorder %s17, 1
    %p154 = por %p152, %p153
    %p155 = scmp.ne.s32.totalorder %s144, %s145
    %p156 = scmp.eq.s32.totalorder %s17, 0
    %p157 = por %p155, %p156
    %p158 = scmp.ne.s32.totalorder %s144, %s145
    %p159 = scmp.eq.s32.totalorder %s18, 1
    %p160 = por %p158, %p159
    %p162 = scmp.ne.s32.totalorder %s145, %s161
    %p163 = scmp.eq.s32.totalorder %s18, 0
    %p164 = por %p162, %p163
    %s165 = ssub.s32 %s19, %s31
    %p166 = scmp.eq.s32.totalorder %s165, 0
    %s168 = sadd.s32 %s167, 1
    %s169 = scalar_select %p166, %s167, %s168
    %p172 = pneg %p166
    %p173 = scmp.eq.s32.totalorder %s12, 1
    %p174 = por %p172, %p173
    %p175 = scmp.ne.s32.totalorder %s167, %s170
    %p176 = scmp.eq.s32.totalorder %s12, 0
    %p177 = por %p175, %p176
    %p178 = scmp.ne.s32.totalorder %s167, %s170
    %p179 = scmp.eq.s32.totalorder %s17, 1
    %p180 = por %p178, %p179
    %p181 = scmp.ne.s32.totalorder %s170, %s171
    %p182 = scmp.eq.s32.totalorder %s17, 0
    %p183 = por %p181, %p182
    %p184 = scmp.ne.s32.totalorder %s170, %s171
    %p185 = scmp.eq.s32.totalorder %s18, 1
    %p186 = por %p184, %p185
    %p188 = scmp.ne.s32.totalorder %s171, %s187
    %p189 = scmp.eq.s32.totalorder %s18, 0
    %p190 = por %p188, %p189
    %p191 = scmp.le.s32.totalorder 1, %s12
    %p192 = scmp.lt.s32.totalorder %s12, 3
    %p193 = pnand %p191, %p192
    %p194 = pneg %p193
    // Predicated region
    $region9: #{resolution_loss.4} parent=5 // pred_check
      _
    $region10: #{resolution_loss.4} parent=5 // pred_check_branch
      %196 = sbr.rel (%p193) target = $region12
    $region11: #{resolution_loss.4} parent=5 // pred_region
      %s197 = ssub.s32 %s12, 1
      // Predicated region
      $region13: #{resolution_loss.4} parent=11 // pred_check
        %p198 = pneg %p101
      $region14: #{resolution_loss.4} parent=11 // pred_check_branch
        %200 = sbr.rel (%p198) target = $region16
      $region15: #{resolution_loss.4} parent=11 // pred_region
        _
      $region16: #{resolution_loss.4} parent=11 // pred_fallthru
        _
    $region12: #{resolution_loss.4} parent=5 // pred_fallthru
      _
    %p201 = scmp.lt.s32.totalorder %s12, 2
    // Predicated region
    $region17: #{resolution_loss.4} parent=5 // pred_check
      %p202 = pneg %p201
    $region18: #{resolution_loss.4} parent=5 // pred_check_branch
      %204 = sbr.rel (%p202) target = $region20
    $region19: #{resolution_loss.4} parent=5 // pred_region
      // Predicated region
      $region21: #{resolution_loss.4} parent=19 // pred_check
        %p205 = pneg %p46
      $region22: #{resolution_loss.4} parent=19 // pred_check_branch
        %207 = sbr.rel (%p205) target = $region24
      $region23: #{resolution_loss.4} parent=19 // pred_region
        %p208 = scmp.lt.s32.totalorder %s19, 1
        %s209 = scalar_select %p208, %s19, 1
        %p210 = scmp.lt.s32.totalorder %s20, 0
        %s211 = scalar_select %p210, %s20, 0
        %s212 = sadd.s32 %s211, %s209
        %s213 = smul.addr %s212, 4
        %s214 = scalar_lea.vmem %s0, %s213
      $region24: #{resolution_loss.4} parent=19 // pred_fallthru
        _
      // Predicated region
      $region25: #{resolution_loss.4} parent=19 // pred_check
        %p215 = pneg %p74
      $region26: #{resolution_loss.4} parent=19 // pred_check_branch
        %217 = sbr.rel (%p215) target = $region28
      $region27: #{resolution_loss.4} parent=19 // pred_region
        %p218 = scmp.lt.s32.totalorder %s19, 1
        %s219 = scalar_select %p218, %s19, 1
        %p220 = scmp.lt.s32.totalorder %s20, 0
        %s221 = scalar_select %p220, %s20, 0
        %s222 = sadd.s32 %s221, %s219
        %s223 = smul.addr %s222, 4
        %s224 = scalar_lea.vmem %s1, %s223
      $region28: #{resolution_loss.4} parent=19 // pred_fallthru
        _
    $region20: #{resolution_loss.4} parent=5 // pred_fallthru
      _
    %p225 = scmp.le.s32.totalorder 1, %s12
    %p226 = scmp.lt.s32.totalorder %s12, 3
    %p227 = pnand %p225, %p226
    %p228 = pneg %p227
    // Predicated region
    $region29: #{resolution_loss.4} parent=5 // pred_check
      _
    $region30: #{resolution_loss.4} parent=5 // pred_check_branch
      %230 = sbr.rel (%p227) target = $region32
    $region31: #{resolution_loss.4} parent=5 // pred_region
      %s231 = ssub.s32 %s12, 1
      %p232 = scmp.lt.s32.totalorder %s21, 1
      %s233 = scalar_select %p232, %s21, 1
      %p234 = scmp.lt.s32.totalorder %s22, 0
      %s235 = scalar_select %p234, %s22, 0
      %s236 = sadd.s32 %s235, %s233
      %s237 = smul.addr %s236, 4
      %s238 = scalar_lea.vmem %s0, %s237
      %p239 = pneg %p52
      %p240 = pneg %p49
      %p241 = scmp.lt.s32.totalorder %s21, 1
      %s242 = scalar_select %p241, %s21, 1
      %p243 = scmp.lt.s32.totalorder %s22, 0
      %s244 = scalar_select %p243, %s22, 0
      %s245 = sadd.s32 %s244, %s242
      %s246 = smul.addr %s245, 4
      %s247 = scalar_lea.vmem %s1, %s246
      %p248 = pneg %p80
      %p249 = pneg %p77
      %p250 = pneg %p101
      %p251 = pneg %p98
      %p252 = pneg %p129
      %p253 = pneg %p126
      %p254 = scmp.lt.s32.totalorder %s21, 1
      %s255 = scalar_select %p254, %s21, 1
      %p256 = scmp.lt.s32.totalorder %s22, 0
      %s257 = scalar_select %p256, %s22, 0
      %s258 = smul.addr %s255, 2
      %s259 = sadd.s32 %s257, %s258
      %s260 = smul.addr %s259, 4
      %s261 = scalar_lea.vmem %s3, %s260
      %p262 = pneg %p157
      %p263 = pneg %p154
      %p264 = scmp.lt.s32.totalorder %s21, 1
      %s265 = scalar_select %p264, %s21, 1
      %p266 = scmp.lt.s32.totalorder %s22, 0
      %s267 = scalar_select %p266, %s22, 0
      %s268 = smul.addr %s265, 2
      %s269 = sadd.s32 %s267, %s268
      %s270 = smul.addr %s269, 4
      %s271 = scalar_lea.vmem %s4, %s270
      %p272 = pneg %p183
      %p273 = pneg %p180
      %p274 = scmp.lt.s32.totalorder %s21, 1
      %s275 = scalar_select %p274, %s21, 1
      %s276 = smul.addr %s275, 8
      %s277 = scalar_lea.vmem %s5, %s276
      %p278 = scmp.lt.s32.totalorder %s21, 1
      %s279 = scalar_select %p278, %s21, 1
      %p280 = scmp.lt.s32.totalorder %s22, 0
      %s281 = scalar_select %p280, %s22, 0
      %s282 = sadd.s32 %s281, %s279
      %s283 = smul.addr %s282, 4
      %s284 = scalar_lea.vmem %s0, %s283
      %p285 = scmp.lt.s32.totalorder %s21, 1
      %s286 = scalar_select %p285, %s21, 1
      %p287 = scmp.lt.s32.totalorder %s22, 0
      %s288 = scalar_select %p287, %s22, 0
      %s289 = sadd.s32 %s288, %s286
      %s290 = smul.addr %s289, 4
      %s291 = scalar_lea.vmem %s1, %s290
      %p292 = scmp.lt.s32.totalorder %s21, 1
      %s293 = scalar_select %p292, %s21, 1
      %p294 = scmp.lt.s32.totalorder %s22, 0
      %s295 = scalar_select %p294, %s22, 0
      %s296 = smul.addr %s293, 2
      %s297 = sadd.s32 %s295, %s296
      %s298 = smul.addr %s297, 4
      %s299 = scalar_lea.vmem %s3, %s298
      %p300 = scmp.lt.s32.totalorder %s21, 1
      %s301 = scalar_select %p300, %s21, 1
      %p302 = scmp.lt.s32.totalorder %s22, 0
      %s303 = scalar_select %p302, %s22, 0
      %s304 = smul.addr %s301, 2
      %s305 = sadd.s32 %s303, %s304
      %s306 = smul.addr %s305, 4
      %s307 = scalar_lea.vmem %s4, %s306
      %p308 = scmp.lt.s32.totalorder %s21, 1
      %s309 = scalar_select %p308, %s21, 1
      %s310 = smul.addr %s309, 8
      %s311 = scalar_lea.vmem %s5, %s310
      %p313 = scmp.eq.s32.totalorder %s22, 0
      // Predicated region
      $region33: #{resolution_loss.4} parent=31 // pred_check
        %p314 = pneg %p313
      $region34: #{resolution_loss.4} parent=31 // pred_check_branch
        %316 = sbr.rel (%p314) target = $region36
      $region35: #{resolution_loss.4} parent=31 // pred_region
        %vm317 = vcmask 523264
        %318 = vst.msk [vmem:[%s311] sm:$0xff] %vm317, 0.0
      $region36: #{resolution_loss.4} parent=31 // pred_fallthru
        _
      %v319 = vld [vmem:[%s2] sm:$0xf]
      %v320 = vld [vmem:[%s2 + $0x4] sm:$0xf]
      %v321 = vld [vmem:[%s284] sm:$0xf]
      %v322 = vld [vmem:[%s291] sm:$0xf]
      %v325 = vunpack.c.l.b16 %v319
      %v326 = vunpack.c.l.b16 %v320
      %v327 = vpack.c.b16 %v326, %v325
      %vm328 = vcmask 64512
      %v330 = vsel %vm328, %v327, 0
      %vm332 = vcmask 1043456
      %v334 = vsel %vm332, %v321, 0
      %336 = vmatprep.subr.bf16.mxu0 0
      %337 = vmatpush1.bf16.msra.mxu0 0
      %338 = vmatprep.subr.bf16.mxu0 0
      %339 = vmatpush1.bf16.msra.mxu0 0
      %340 = vmatprep.subr.bf16.mxu0 0
      %341 = vmatpush1.bf16.msra.mxu0 0
      %342 = vmatprep.subr.bf16.mxu0 0
      %343 = vmatpush1.bf16.msra.mxu0 0
      %344 = vmatprep.subr.bf16.mxu0 0
      %345 = vmatpush1.bf16.msra.mxu0 0
      %346 = vmatprep.subr.bf16.mxu0 0
      %347 = vmatpush1.bf16.msra.mxu0 0
      %348 = vmatprep.subr.bf16.mxu0 0
      %349 = vmatpush1.bf16.msra.mxu0 0
      %350 = vmatprep.subr.bf16.mxu0 0
      %351 = vmatpush1.bf16.msra.mxu0 %v334
      %352 = vmatprep.subr.bf16.mxu0 0
      %353 = vmatpush2.bf16.msra.mxu0 0
      %354 = vmatprep.subr.bf16.mxu0 0
      %355 = vmatpush2.bf16.msra.mxu0 0
      %356 = vmatprep.subr.bf16.mxu0 0
      %357 = vmatpush2.bf16.msra.mxu0 0
      %358 = vmatprep.subr.bf16.mxu0 0
      %359 = vmatpush2.bf16.msra.mxu0 0
      %360 = vmatprep.subr.bf16.mxu0 0
      %361 = vmatpush2.bf16.msra.mxu0 0
      %362 = vmatprep.subr.bf16.mxu0 0
      %363 = vmatpush2.bf16.msra.mxu0 0
      %364 = vmatprep.subr.bf16.mxu0 0
      %365 = vmatpush2.bf16.msra.mxu0 0
      %366 = vmatprep.subr.bf16.mxu0 0
      %367 = vmatpush2.bf16.msra.mxu0 0
      %368 = vmatprep.mubr.bf16.mxu0 0
      %369 = vmatmul.mubr.bf16.gmra.mxu0 %v330
      %v370 = vpop.f32.mrf.mxu0
      %v371 = vadd.f32 0.0, %v370
      %v372 = vpop.f32.mrf.mxu0
      %v373 = vpop.f32.mrf.mxu0
      %v374 = vadd.f32 0.0, %v373
      %v375 = vpop.f32.mrf.mxu0
      %376 = vdwg.mxu0
      %v377 = vmax.f32 %v371, 0.0
      %v378 = vmax.f32 %v374, 0.0
      %v380 = vsel %vm332, %v322, 0
      %382 = vmatprep.subr.bf16.mxu0 0
      %383 = vmatpush1.bf16.msra.mxu0 0
      %384 = vmatprep.subr.bf16.mxu0 0
      %385 = vmatpush1.bf16.msra.mxu0 0
      %386 = vmatprep.subr.bf16.mxu0 0
      %387 = vmatpush1.bf16.msra.mxu0 0
      %388 = vmatprep.subr.bf16.mxu0 0
      %389 = vmatpush1.bf16.msra.mxu0 0
      %390 = vmatprep.subr.bf16.mxu0 0
      %391 = vmatpush1.bf16.msra.mxu0 0
      %392 = vmatprep.subr.bf16.mxu0 0
      %393 = vmatpush1.bf16.msra.mxu0 0
      %394 = vmatprep.subr.bf16.mxu0 0
      %395 = vmatpush1.bf16.msra.mxu0 0
      %396 = vmatprep.subr.bf16.mxu0 0
      %397 = vmatpush1.bf16.msra.mxu0 %v380
      %398 = vmatprep.subr.bf16.mxu0 0
      %399 = vmatpush2.bf16.msra.mxu0 0
      %400 = vmatprep.subr.bf16.mxu0 0
      %401 = vmatpush2.bf16.msra.mxu0 0
      %402 = vmatprep.subr.bf16.mxu0 0
      %403 = vmatpush2.bf16.msra.mxu0 0
      %404 = vmatprep.subr.bf16.mxu0 0
      %405 = vmatpush2.bf16.msra.mxu0 0
      %406 = vmatprep.subr.bf16.mxu0 0
      %407 = vmatpush2.bf16.msra.mxu0 0
      %408 = vmatprep.subr.bf16.mxu0 0
      %409 = vmatpush2.bf16.msra.mxu0 0
      %410 = vmatprep.subr.bf16.mxu0 0
      %411 = vmatpush2.bf16.msra.mxu0 0
      %412 = vmatprep.subr.bf16.mxu0 0
      %413 = vmatpush2.bf16.msra.mxu0 0
      %414 = vmatprep.mubr.bf16.mxu0 0
      %415 = vmatmul.mubr.bf16.gmra.mxu0 %v330
      %v416 = vpop.f32.mrf.mxu0
      %v417 = vadd.f32 0.0, %v416
      %v418 = vpop.f32.mrf.mxu0
      %v419 = vpop.f32.mrf.mxu0
      %v420 = vadd.f32 0.0, %v419
      %v421 = vpop.f32.mrf.mxu0
      %422 = vdwg.mxu0
      %v423 = vmax.f32 %v417, 0.0
      %v424 = vmax.f32 %v420, 0.0
      %v425 = vmul.f32 %v377, %v377
      %v426 = vmul.f32 %v378, %v378
      %vm427 = vcmask 523264
      %v428 = vsel %vm427, %v425, 0.0
      %v429 = vsel %vm427, %v426, 0.0
      %v430 = vadd.f32 %v428, %v429
      %v431 = vrot.slane %v430, 4
      %v432 = vadd.f32 %v430, %v431
      %v433 = vrot.slane %v432, 2
      %v434 = vadd.f32 %v432, %v433
      %v435 = vrot.slane %v434, 1
      %v436 = vadd.f32 %v434, %v435
      %v437 = vadd.f32 %v436, 1e-10
      %v438 = vrsqrt.pop %v437
      %v439 = vmul.f32 %v377, %v438
      %v440 = vmul.f32 %v378, %v438
      %v441 = vmul.f32 %v423, %v423
      %v442 = vmul.f32 %v424, %v424
      %v443 = vsel %vm427, %v441, 0.0
      %v444 = vsel %vm427, %v442, 0.0
      %v445 = vadd.f32 %v443, %v444
      %v446 = vrot.slane %v445, 4
      %v447 = vadd.f32 %v445, %v446
      %v448 = vrot.slane %v447, 2
      %v449 = vadd.f32 %v447, %v448
      %v450 = vrot.slane %v449, 1
      %v451 = vadd.f32 %v449, %v450
      %v452 = vadd.f32 %v451, 1e-10
      %v453 = vrsqrt.pop %v452
      %v454 = vmul.f32 %v423, %v453
      %v455 = vmul.f32 %v424, %v453
      %v456 = vpack.c.bf16 %v440, %v439
      %v458 = vunpack.c.l.b16 %v456
      %v459 = vunpack.c.h.b16 %v456
      %v460 = vpack.c.b16 %v458, %v458
      %v461 = vpack.c.b16 %v459, %v459
      %vm464 = vcmask 519168
      %465 = vst.msk [vmem:[%s299] sm:$0xf] %vm464, %v460
      %466 = vst.msk [vmem:[%s299 + $0x4] sm:$0xf] %vm464, %v461
      %v467 = vpack.c.bf16 %v455, %v454
      %v469 = vunpack.c.l.b16 %v467
      %v470 = vunpack.c.h.b16 %v467
      %v471 = vpack.c.b16 %v469, %v469
      %v472 = vpack.c.b16 %v470, %v470
      %475 = vst.msk [vmem:[%s307] sm:$0xf] %vm464, %v471
      %476 = vst.msk [vmem:[%s307 + $0x4] sm:$0xf] %vm464, %v472
      %v477 = vsub.f32 %v439, %v454
      %v478 = vsub.f32 %v440, %v455
      %v479 = vld [vmem:[%s311] sm:$0xff]
      %v480 = vmul.f32 %v477, %v477
      %v481 = vmul.f32 %v478, %v478
      %v482 = vadd.f32 %v480, %v481
      %v483 = vadd.f32 %v479, %v482
      %484 = vst.msk [vmem:[%s311] sm:$0xff] %vm427, %v483
      %p485 = scmp.lt.s32.totalorder %s21, 1
      %s486 = scalar_select %p485, %s21, 1
      %p487 = scmp.lt.s32.totalorder %s22, 0
      %s488 = scalar_select %p487, %s22, 0
      %s489 = smul.addr %s486, 2
      %s490 = sadd.s32 %s488, %s489
      %s491 = smul.addr %s490, 4
      %s492 = scalar_lea.vmem %s3, %s491
      %p493 = scmp.lt.s32.totalorder %s21, 1
      %s494 = scalar_select %p493, %s21, 1
      %p495 = scmp.lt.s32.totalorder %s22, 0
      %s496 = scalar_select %p495, %s22, 0
      %s497 = smul.addr %s494, 2
      %s498 = sadd.s32 %s496, %s497
      %s499 = smul.addr %s498, 4
      %s500 = scalar_lea.vmem %s4, %s499
      %p501 = scmp.lt.s32.totalorder %s21, 1
      %s502 = scalar_select %p501, %s21, 1
      %s503 = smul.addr %s502, 8
      %s504 = scalar_lea.vmem %s5, %s503
      // Predicated region
      $region37: #{resolution_loss.4} parent=31 // pred_check
        %p505 = pneg %p126
      $region38: #{resolution_loss.4} parent=31 // pred_check_branch
        %507 = sbr.rel (%p505) target = $region40
      $region39: #{resolution_loss.4} parent=31 // pred_region
        _
      $region40: #{resolution_loss.4} parent=31 // pred_fallthru
        _
      // Predicated region
      $region41: #{resolution_loss.4} parent=31 // pred_check
        %p508 = pneg %p154
      $region42: #{resolution_loss.4} parent=31 // pred_check_branch
        %510 = sbr.rel (%p508) target = $region44
      $region43: #{resolution_loss.4} parent=31 // pred_region
        _
      $region44: #{resolution_loss.4} parent=31 // pred_fallthru
        _
      // Predicated region
      $region45: #{resolution_loss.4} parent=31 // pred_check
        %p511 = pneg %p180
      $region46: #{resolution_loss.4} parent=31 // pred_check_branch
        %513 = sbr.rel (%p511) target = $region48
      $region47: #{resolution_loss.4} parent=31 // pred_region
        _
      $region48: #{resolution_loss.4} parent=31 // pred_fallthru
        _
    $region32: #{resolution_loss.4} parent=5 // pred_fallthru
      _
    %p514 = scmp.le.s32.totalorder 2, %s12
    // Predicated region
    $region49: #{resolution_loss.4} parent=5 // pred_check
      %p515 = pneg %p514
    $region50: #{resolution_loss.4} parent=5 // pred_check_branch
      %517 = sbr.rel (%p515) target = $region52
    $region51: #{resolution_loss.4} parent=5 // pred_region
      %s518 = ssub.s32 %s12, 2
      // Predicated region
      $region53: #{resolution_loss.4} parent=51 // pred_check
        %p519 = pneg %p132
      $region54: #{resolution_loss.4} parent=51 // pred_check_branch
        %521 = sbr.rel (%p519) target = $region56
      $region55: #{resolution_loss.4} parent=51 // pred_region
        %p522 = scmp.lt.s32.totalorder %s23, 1
        %s523 = scalar_select %p522, %s23, 1
        %p524 = scmp.lt.s32.totalorder %s24, 0
        %s525 = scalar_select %p524, %s24, 0
        %s526 = smul.addr %s523, 2
        %s527 = sadd.s32 %s525, %s526
        %s528 = smul.addr %s527, 4
        %s529 = scalar_lea.vmem %s3, %s528
      $region56: #{resolution_loss.4} parent=51 // pred_fallthru
        _
      // Predicated region
      $region57: #{resolution_loss.4} parent=51 // pred_check
        %p530 = pneg %p160
      $region58: #{resolution_loss.4} parent=51 // pred_check_branch
        %532 = sbr.rel (%p530) target = $region60
      $region59: #{resolution_loss.4} parent=51 // pred_region
        %p533 = scmp.lt.s32.totalorder %s23, 1
        %s534 = scalar_select %p533, %s23, 1
        %p535 = scmp.lt.s32.totalorder %s24, 0
        %s536 = scalar_select %p535, %s24, 0
        %s537 = smul.addr %s534, 2
        %s538 = sadd.s32 %s536, %s537
        %s539 = smul.addr %s538, 4
        %s540 = scalar_lea.vmem %s4, %s539
      $region60: #{resolution_loss.4} parent=51 // pred_fallthru
        _
      // Predicated region
      $region61: #{resolution_loss.4} parent=51 // pred_check
        %p541 = pneg %p186
      $region62: #{resolution_loss.4} parent=51 // pred_check_branch
        %543 = sbr.rel (%p541) target = $region64
      $region63: #{resolution_loss.4} parent=51 // pred_region
        %p544 = scmp.lt.s32.totalorder %s23, 1
        %s545 = scalar_select %p544, %s23, 1
        %s546 = smul.addr %s545, 8
        %s547 = scalar_lea.vmem %s5, %s546
      $region64: #{resolution_loss.4} parent=51 // pred_fallthru
        _
    $region52: #{resolution_loss.4} parent=5 // pred_fallthru
      _
  $region6: #{resolution_loss.4} parent=0 // loop_footer
    %s16 = sadd.s32 1, %s12
  $region7: #{resolution_loss.4} parent=0 // loop_footer_branch
    %11 = sbr.rel target = $region3
  $region8: #{resolution_loss.4} parent=0 // loop_exit
    _

// kernel: resolution_loss.3
$region0: #{resolution_loss.3}
  #allocation0 [shape = 'u32[]', space=smem, size = 0x4, offset = 0x4, fixed_abs, tag = 'smem constant byte address 0x4 - core index']
  #allocation1 [shape = 'u32[144,128]{1,0:T(1,128)}', space=vmem, size = 0x12000, scoped, tag = 'internal scratch']
  %s0 = inlined_call_operand.vmem [shape: f32[2,3,256], index: 0, kind: input, shape index: {}]
  %s1 = inlined_call_operand.vmem [shape: f32[2,3,256], index: 1, kind: input, shape index: {}]
  %s2 = inlined_call_operand.vmem [shape: bf16[8,3], index: 2, kind: input, shape index: {}]
  %s3 = inlined_call_operand.vmem [shape: bf16[2,8,256], index: 3, kind: output, shape index: {0}]
  %s4 = inlined_call_operand.vmem [shape: bf16[2,8,256], index: 4, kind: output, shape index: {1}]
  %s5 = inlined_call_operand.vmem [shape: f32[2,8,128], index: 5, kind: output, shape index: {2}]
  %s6 = inlined_call_operand.vmem [shape: f32[2,3,128], index: 6, kind: output, shape index: {3}]
  %7 = xla_tuple %s3, %s4, %s5, %s6
  %s8 = sld [smem:[#allocation0]]
  $region73: #{resolution_loss.3} parent=0
    _
  %s10 = ssub.s32 1, %s8
  %s11 = scalar_select 0, %s10, %s8
  loop: start=0, step=1, limit=4
  $region2: #{resolution_loss.3} parent=0 // loop_pre_header
    _
  $region3: #{resolution_loss.3} parent=0 // loop_header
    %s13 = sphi 0, %s17
    %p14 = scmp.ge.s32.totalorder %s13, 4
    %s20 = sphi 0, %s32
    %s21 = sphi 0, %s28
    %s22 = sphi 0, %s20
    %s23 = sphi 0, %s21
    %s24 = sphi 0, %s22
    %s25 = sphi 0, %s23
    %s37 = sphi 0, %s39
    %s40 = sphi 0, %s37
    %s41 = sphi 0, %s40
    %s57 = sphi 0, %s41
    %s65 = sphi 0, %s67
    %s68 = sphi 0, %s65
    %s69 = sphi 0, %s68
    %s85 = sphi 0, %s69
    %s89 = sphi 0, %s89
    %s91 = sphi 0, %s89
    %s92 = sphi 0, %s91
    %s106 = sphi 0, %s92
    %s114 = sphi 0, %s116
    %s117 = sphi 0, %s114
    %s118 = sphi 0, %s117
    %s134 = sphi 0, %s118
    %s142 = sphi 0, %s144
    %s145 = sphi 0, %s142
    %s146 = sphi 0, %s145
    %s162 = sphi 0, %s146
    %s168 = sphi 0, %s170
    %s171 = sphi 0, %s168
    %s172 = sphi 0, %s171
    %s188 = sphi 0, %s172
    %s194 = sphi 0, %s196
    %s197 = sphi 0, %s194
    %s198 = sphi 0, %s197
    %s214 = sphi 0, %s198
  $region4: #{resolution_loss.3} parent=0 // loop_header_branch
    %16 = sbr.rel (%p14) target = $region8
  $region5: #{resolution_loss.3} parent=0 // loop_body
    %s18 = ssub.s32 %s13, 1
    %s19 = ssub.s32 %s13, 2
    %s26 = sadd.s32 1, %s21
    %p27 = scmp.ge.s32.totalorder %s26, 1
    %s28 = scalar_select %p27, 0, %s26
    %s29 = sadd.s32 1, %s20
    %s30 = scalar_select %p27, %s29, %s20
    %p31 = scmp.ge.s32.totalorder %s30, 2
    %s32 = scalar_select %p31, 0, %s30
    %s33 = ssub.s32 %s20, %s32
    %s34 = ssub.s32 %s21, %s28
    %s35 = sor.u32 %s33, %s34
    %p36 = scmp.eq.s32.totalorder %s35, 0
    %s38 = sadd.s32 %s37, 1
    %s39 = scalar_select %p36, %s37, %s38
    %p42 = pneg %p36
    %p43 = scmp.eq.s32.totalorder %s13, 1
    %p44 = por %p42, %p43
    %p45 = scmp.ne.s32.totalorder %s37, %s40
    %p46 = scmp.eq.s32.totalorder %s13, 0
    %p47 = por %p45, %p46
    %p48 = scmp.ne.s32.totalorder %s37, %s40
    %p49 = scmp.eq.s32.totalorder %s18, 1
    %p50 = por %p48, %p49
    %p51 = scmp.ne.s32.totalorder %s40, %s41
    %p52 = scmp.eq.s32.totalorder %s18, 0
    %p53 = por %p51, %p52
    %p54 = scmp.ne.s32.totalorder %s40, %s41
    %p55 = scmp.eq.s32.totalorder %s19, 1
    %p56 = por %p54, %p55
    %p58 = scmp.ne.s32.totalorder %s41, %s57
    %p59 = scmp.eq.s32.totalorder %s19, 0
    %p60 = por %p58, %p59
    %s61 = ssub.s32 %s20, %s32
    %s62 = ssub.s32 %s21, %s28
    %s63 = sor.u32 %s61, %s62
    %p64 = scmp.eq.s32.totalorder %s63, 0
    %s66 = sadd.s32 %s65, 1
    %s67 = scalar_select %p64, %s65, %s66
    %p70 = pneg %p64
    %p71 = scmp.eq.s32.totalorder %s13, 1
    %p72 = por %p70, %p71
    %p73 = scmp.ne.s32.totalorder %s65, %s68
    %p74 = scmp.eq.s32.totalorder %s13, 0
    %p75 = por %p73, %p74
    %p76 = scmp.ne.s32.totalorder %s65, %s68
    %p77 = scmp.eq.s32.totalorder %s18, 1
    %p78 = por %p76, %p77
    %p79 = scmp.ne.s32.totalorder %s68, %s69
    %p80 = scmp.eq.s32.totalorder %s18, 0
    %p81 = por %p79, %p80
    %p82 = scmp.ne.s32.totalorder %s68, %s69
    %p83 = scmp.eq.s32.totalorder %s19, 1
    %p84 = por %p82, %p83
    %p86 = scmp.ne.s32.totalorder %s69, %s85
    %p87 = scmp.eq.s32.totalorder %s19, 0
    %p88 = por %p86, %p87
    %s90 = sadd.s32 %s89, 1
    %p93 = scmp.eq.s32.totalorder %s13, 1
    %p94 = scmp.ne.s32.totalorder %s89, %s91
    %p95 = scmp.eq.s32.totalorder %s13, 0
    %p96 = por %p94, %p95
    %p97 = scmp.ne.s32.totalorder %s89, %s91
    %p98 = scmp.eq.s32.totalorder %s18, 1
    %p99 = por %p97, %p98
    %p100 = scmp.ne.s32.totalorder %s91, %s92
    %p101 = scmp.eq.s32.totalorder %s18, 0
    %p102 = por %p100, %p101
    %p103 = scmp.ne.s32.totalorder %s91, %s92
    %p104 = scmp.eq.s32.totalorder %s19, 1
    %p105 = por %p103, %p104
    %p107 = scmp.ne.s32.totalorder %s92, %s106
    %p108 = scmp.eq.s32.totalorder %s19, 0
    %p109 = por %p107, %p108
    %s110 = ssub.s32 %s20, %s32
    %s111 = ssub.s32 %s21, %s28
    %s112 = sor.u32 %s110, %s111
    %p113 = scmp.eq.s32.totalorder %s112, 0
    %s115 = sadd.s32 %s114, 1
    %s116 = scalar_select %p113, %s114, %s115
    %p119 = pneg %p113
    %p120 = scmp.eq.s32.totalorder %s13, 1
    %p121 = por %p119, %p120
    %p122 = scmp.ne.s32.totalorder %s114, %s117
    %p123 = scmp.eq.s32.totalorder %s13, 0
    %p124 = por %p122, %p123
    %p125 = scmp.ne.s32.totalorder %s114, %s117
    %p126 = scmp.eq.s32.totalorder %s18, 1
    %p127 = por %p125, %p126
    %p128 = scmp.ne.s32.totalorder %s117, %s118
    %p129 = scmp.eq.s32.totalorder %s18, 0
    %p130 = por %p128, %p129
    %p131 = scmp.ne.s32.totalorder %s117, %s118
    %p132 = scmp.eq.s32.totalorder %s19, 1
    %p133 = por %p131, %p132
    %p135 = scmp.ne.s32.totalorder %s118, %s134
    %p136 = scmp.eq.s32.totalorder %s19, 0
    %p137 = por %p135, %p136
    %s138 = ssub.s32 %s20, %s32
    %s139 = ssub.s32 %s21, %s28
    %s140 = sor.u32 %s138, %s139
    %p141 = scmp.eq.s32.totalorder %s140, 0
    %s143 = sadd.s32 %s142, 1
    %s144 = scalar_select %p141, %s142, %s143
    %p147 = pneg %p141
    %p148 = scmp.eq.s32.totalorder %s13, 1
    %p149 = por %p147, %p148
    %p150 = scmp.ne.s32.totalorder %s142, %s145
    %p151 = scmp.eq.s32.totalorder %s13, 0
    %p152 = por %p150, %p151
    %p153 = scmp.ne.s32.totalorder %s142, %s145
    %p154 = scmp.eq.s32.totalorder %s18, 1
    %p155 = por %p153, %p154
    %p156 = scmp.ne.s32.totalorder %s145, %s146
    %p157 = scmp.eq.s32.totalorder %s18, 0
    %p158 = por %p156, %p157
    %p159 = scmp.ne.s32.totalorder %s145, %s146
    %p160 = scmp.eq.s32.totalorder %s19, 1
    %p161 = por %p159, %p160
    %p163 = scmp.ne.s32.totalorder %s146, %s162
    %p164 = scmp.eq.s32.totalorder %s19, 0
    %p165 = por %p163, %p164
    %s166 = ssub.s32 %s20, %s32
    %p167 = scmp.eq.s32.totalorder %s166, 0
    %s169 = sadd.s32 %s168, 1
    %s170 = scalar_select %p167, %s168, %s169
    %p173 = pneg %p167
    %p174 = scmp.eq.s32.totalorder %s13, 1
    %p175 = por %p173, %p174
    %p176 = scmp.ne.s32.totalorder %s168, %s171
    %p177 = scmp.eq.s32.totalorder %s13, 0
    %p178 = por %p176, %p177
    %p179 = scmp.ne.s32.totalorder %s168, %s171
    %p180 = scmp.eq.s32.totalorder %s18, 1
    %p181 = por %p179, %p180
    %p182 = scmp.ne.s32.totalorder %s171, %s172
    %p183 = scmp.eq.s32.totalorder %s18, 0
    %p184 = por %p182, %p183
    %p185 = scmp.ne.s32.totalorder %s171, %s172
    %p186 = scmp.eq.s32.totalorder %s19, 1
    %p187 = por %p185, %p186
    %p189 = scmp.ne.s32.totalorder %s172, %s188
    %p190 = scmp.eq.s32.totalorder %s19, 0
    %p191 = por %p189, %p190
    %s192 = ssub.s32 %s20, %s32
    %p193 = scmp.eq.s32.totalorder %s192, 0
    %s195 = sadd.s32 %s194, 1
    %s196 = scalar_select %p193, %s194, %s195
    %p199 = pneg %p193
    %p200 = scmp.eq.s32.totalorder %s13, 1
    %p201 = por %p199, %p200
    %p202 = scmp.ne.s32.totalorder %s194, %s197
    %p203 = scmp.eq.s32.totalorder %s13, 0
    %p204 = por %p202, %p203
    %p205 = scmp.ne.s32.totalorder %s194, %s197
    %p206 = scmp.eq.s32.totalorder %s18, 1
    %p207 = por %p205, %p206
    %p208 = scmp.ne.s32.totalorder %s197, %s198
    %p209 = scmp.eq.s32.totalorder %s18, 0
    %p210 = por %p208, %p209
    %p211 = scmp.ne.s32.totalorder %s197, %s198
    %p212 = scmp.eq.s32.totalorder %s19, 1
    %p213 = por %p211, %p212
    %p215 = scmp.ne.s32.totalorder %s198, %s214
    %p216 = scmp.eq.s32.totalorder %s19, 0
    %p217 = por %p215, %p216
    %p218 = scmp.le.s32.totalorder 1, %s13
    %p219 = scmp.lt.s32.totalorder %s13, 3
    %p220 = pnand %p218, %p219
    %p221 = pneg %p220
    // Predicated region
    $region9: #{resolution_loss.3} parent=5 // pred_check
      _
    $region10: #{resolution_loss.3} parent=5 // pred_check_branch
      %223 = sbr.rel (%p220) target = $region12
    $region11: #{resolution_loss.3} parent=5 // pred_region
      %s224 = ssub.s32 %s13, 1
      // Predicated region
      $region13: #{resolution_loss.3} parent=11 // pred_check
        %p225 = pneg %p102
      $region14: #{resolution_loss.3} parent=11 // pred_check_branch
        %227 = sbr.rel (%p225) target = $region16
      $region15: #{resolution_loss.3} parent=11 // pred_region
        _
      $region16: #{resolution_loss.3} parent=11 // pred_fallthru
        _
    $region12: #{resolution_loss.3} parent=5 // pred_fallthru
      _
    %p228 = scmp.lt.s32.totalorder %s13, 2
    // Predicated region
    $region17: #{resolution_loss.3} parent=5 // pred_check
      %p229 = pneg %p228
    $region18: #{resolution_loss.3} parent=5 // pred_check_branch
      %231 = sbr.rel (%p229) target = $region20
    $region19: #{resolution_loss.3} parent=5 // pred_region
      // Predicated region
      $region21: #{resolution_loss.3} parent=19 // pred_check
        %p232 = pneg %p47
      $region22: #{resolution_loss.3} parent=19 // pred_check_branch
        %234 = sbr.rel (%p232) target = $region24
      $region23: #{resolution_loss.3} parent=19 // pred_region
        %s235 = smul.u32 2, %s21
        %p236 = scmp.lt.s32.totalorder %s20, 1
        %s237 = scalar_select %p236, %s20, 1
        %p238 = scmp.lt.s32.totalorder %s235, 1
        %s239 = scalar_select %p238, %s235, 1
        %s240 = smul.addr %s237, 2
        %s241 = sadd.s32 %s239, %s240
        %s242 = smul.addr %s241, 4
        %s243 = scalar_lea.vmem %s0, %s242
        %s244 = smul.u32 2, %s21
      $region24: #{resolution_loss.3} parent=19 // pred_fallthru
        _
      // Predicated region
      $region25: #{resolution_loss.3} parent=19 // pred_check
        %p245 = pneg %p75
      $region26: #{resolution_loss.3} parent=19 // pred_check_branch
        %247 = sbr.rel (%p245) target = $region28
      $region27: #{resolution_loss.3} parent=19 // pred_region
        %s248 = smul.u32 2, %s21
        %p249 = scmp.lt.s32.totalorder %s20, 1
        %s250 = scalar_select %p249, %s20, 1
        %p251 = scmp.lt.s32.totalorder %s248, 1
        %s252 = scalar_select %p251, %s248, 1
        %s253 = smul.addr %s250, 2
        %s254 = sadd.s32 %s252, %s253
        %s255 = smul.addr %s254, 4
        %s256 = scalar_lea.vmem %s1, %s255
        %s257 = smul.u32 2, %s21
      $region28: #{resolution_loss.3} parent=19 // pred_fallthru
        _
    $region20: #{resolution_loss.3} parent=5 // pred_fallthru
      _
    %p258 = scmp.le.s32.totalorder 1, %s13
    %p259 = scmp.lt.s32.totalorder %s13, 3
    %p260 = pnand %p258, %p259
    %p261 = pneg %p260
    // Predicated region
    $region29: #{resolution_loss.3} parent=5 // pred_check
      _
    $region30: #{resolution_loss.3} parent=5 // pred_check_branch
      %263 = sbr.rel (%p260) target = $region32
    $region31: #{resolution_loss.3} parent=5 // pred_region
      %s264 = ssub.s32 %s13, 1
      %s265 = smul.u32 2, %s23
      %p266 = scmp.lt.s32.totalorder %s22, 1
      %s267 = scalar_select %p266, %s22, 1
      %p268 = scmp.lt.s32.totalorder %s265, 1
      %s269 = scalar_select %p268, %s265, 1
      %s270 = smul.addr %s267, 2
      %s271 = sadd.s32 %s269, %s270
      %s272 = smul.addr %s271, 4
      %s273 = scalar_lea.vmem %s0, %s272
      %p274 = pneg %p53
      %p275 = pneg %p50
      %s276 = smul.u32 2, %s23
      %p277 = scmp.lt.s32.totalorder %s22, 1
      %s278 = scalar_select %p277, %s22, 1
      %p279 = scmp.lt.s32.totalorder %s276, 1
      %s280 = scalar_select %p279, %s276, 1
      %s281 = smul.addr %s278, 2
      %s282 = sadd.s32 %s280, %s281
      %s283 = smul.addr %s282, 4
      %s284 = scalar_lea.vmem %s1, %s283
      %p285 = pneg %p81
      %p286 = pneg %p78
      %p287 = pneg %p102
      %p288 = pneg %p99
      %p289 = pneg %p130
      %p290 = pneg %p127
      %s291 = smul.u32 2, %s23
      %p292 = scmp.lt.s32.totalorder %s22, 1
      %s293 = scalar_select %p292, %s22, 1
      %p294 = scmp.lt.s32.totalorder %s291, 1
      %s295 = scalar_select %p294, %s291, 1
      %s296 = smul.addr %s293, 2
      %s297 = sadd.s32 %s295, %s296
      %s298 = smul.addr %s297, 4
      %s299 = scalar_lea.vmem %s3, %s298
      %p300 = pneg %p158
      %p301 = pneg %p155
      %s302 = smul.u32 2, %s23
      %p303 = scmp.lt.s32.totalorder %s22, 1
      %s304 = scalar_select %p303, %s22, 1
      %p305 = scmp.lt.s32.totalorder %s302, 1
      %s306 = scalar_select %p305, %s302, 1
      %s307 = smul.addr %s304, 2
      %s308 = sadd.s32 %s306, %s307
      %s309 = smul.addr %s308, 4
      %s310 = scalar_lea.vmem %s4, %s309
      %p311 = pneg %p184
      %p312 = pneg %p181
      %p313 = scmp.lt.s32.totalorder %s22, 1
      %s314 = scalar_select %p313, %s22, 1
      %s315 = smul.addr %s314, 8
      %s316 = scalar_lea.vmem %s5, %s315
      %p317 = pneg %p210
      %p318 = pneg %p207
      %p319 = scmp.lt.s32.totalorder %s22, 1
      %s320 = scalar_select %p319, %s22, 1
      %s321 = smul.addr %s320, 4
      %s322 = scalar_lea.vmem %s6, %s321
      %s323 = smul.u32 2, %s23
      %p324 = scmp.lt.s32.totalorder %s22, 1
      %s325 = scalar_select %p324, %s22, 1
      %p326 = scmp.lt.s32.totalorder %s323, 1
      %s327 = scalar_select %p326, %s323, 1
      %s328 = smul.addr %s325, 2
      %s329 = sadd.s32 %s327, %s328
      %s330 = smul.addr %s329, 4
      %s331 = scalar_lea.vmem %s0, %s330
      %s332 = smul.u32 2, %s23
      %s333 = smul.u32 2, %s23
      %p334 = scmp.lt.s32.totalorder %s22, 1
      %s335 = scalar_select %p334, %s22, 1
      %p336 = scmp.lt.s32.totalorder %s333, 1
      %s337 = scalar_select %p336, %s333, 1
      %s338 = smul.addr %s335, 2
      %s339 = sadd.s32 %s337, %s338
      %s340 = smul.addr %s339, 4
      %s341 = scalar_lea.vmem %s1, %s340
      %s342 = smul.u32 2, %s23
      %s343 = smul.u32 2, %s23
      %p344 = scmp.lt.s32.totalorder %s22, 1
      %s345 = scalar_select %p344, %s22, 1
      %p346 = scmp.lt.s32.totalorder %s343, 1
      %s347 = scalar_select %p346, %s343, 1
      %s348 = smul.addr %s345, 2
      %s349 = sadd.s32 %s347, %s348
      %s350 = smul.addr %s349, 4
      %s351 = scalar_lea.vmem %s3, %s350
      %s352 = smul.u32 2, %s23
      %s353 = smul.u32 2, %s23
      %p354 = scmp.lt.s32.totalorder %s22, 1
      %s355 = scalar_select %p354, %s22, 1
      %p356 = scmp.lt.s32.totalorder %s353, 1
      %s357 = scalar_select %p356, %s353, 1
      %s358 = smul.addr %s355, 2
      %s359 = sadd.s32 %s357, %s358
      %s360 = smul.addr %s359, 4
      %s361 = scalar_lea.vmem %s4, %s360
      %s362 = smul.u32 2, %s23
      %p363 = scmp.lt.s32.totalorder %s22, 1
      %s364 = scalar_select %p363, %s22, 1
      %s365 = smul.addr %s364, 8
      %s366 = scalar_lea.vmem %s5, %s365
      %p367 = scmp.lt.s32.totalorder %s22, 1
      %s368 = scalar_select %p367, %s22, 1
      %s369 = smul.addr %s368, 4
      %s370 = scalar_lea.vmem %s6, %s369
      %p372 = scmp.eq.s32.totalorder %s23, 0
      // Predicated region
      $region33: #{resolution_loss.3} parent=31 // pred_check
        %p373 = pneg %p372
      $region34: #{resolution_loss.3} parent=31 // pred_check_branch
        %375 = sbr.rel (%p373) target = $region36
      $region35: #{resolution_loss.3} parent=31 // pred_region
        %376 = vst [vmem:[%s366] sm:$0xff] 0.0
        %377 = vst [vmem:[%s370] sm:$0x7] 0.0
      $region36: #{resolution_loss.3} parent=31 // pred_fallthru
        _
      %v378 = vld [vmem:[%s2] sm:$0xf]
      %v379 = vld [vmem:[%s331] sm:$0x77]
      %v380 = vld [vmem:[%s341] sm:$0x77]
      %v382 = vcombine.high %v379, %v379
      %v384 = vpack.c.bf16 %v379, %v379
      %v385 = vpack.c.bf16 %v382, %v382
      %vm386 = vcmask 23552
      %v388 = vsel %vm386, %v378, 0
      %vm390 = vcmask 1040384
      %vm391 = vcmask 1041408
      %v392 = vsel %vm390, 4294967295, 65535
      %v393 = vsel %vm391, %v392, 0
      %v395 = vand.u32 %v384, %v393
      %v398 = vand.u32 %v385, %v393
      %400 = vmatprep.subr.bf16.mxu0 0
      %401 = vmatpush1.bf16.msra.mxu0 0
      %402 = vmatprep.subr.bf16.mxu0 0
      %403 = vmatpush1.bf16.msra.mxu0 0
      %404 = vmatprep.subr.bf16.mxu0 0
      %405 = vmatpush1.bf16.msra.mxu0 0
      %406 = vmatprep.subr.bf16.mxu0 0
      %407 = vmatpush1.bf16.msra.mxu0 0
      %408 = vmatprep.subr.bf16.mxu0 0
      %409 = vmatpush1.bf16.msra.mxu0 0
      %410 = vmatprep.subr.bf16.mxu0 0
      %411 = vmatpush1.bf16.msra.mxu0 0
      %412 = vmatprep.subr.bf16.mxu0 0
      %413 = vmatpush1.bf16.msra.mxu0 0
      %414 = vmatprep.subr.bf16.mxu0 %v398
      %415 = vmatpush1.bf16.msra.mxu0 %v395
      %416 = vmatprep.subr.bf16.mxu0 0
      %417 = vmatpush2.bf16.msra.mxu0 0
      %418 = vmatprep.subr.bf16.mxu0 0
      %419 = vmatpush2.bf16.msra.mxu0 0
      %420 = vmatprep.subr.bf16.mxu0 0
      %421 = vmatpush2.bf16.msra.mxu0 0
      %422 = vmatprep.subr.bf16.mxu0 0
      %423 = vmatpush2.bf16.msra.mxu0 0
      %424 = vmatprep.subr.bf16.mxu0 0
      %425 = vmatpush2.bf16.msra.mxu0 0
      %426 = vmatprep.subr.bf16.mxu0 0
      %427 = vmatpush2.bf16.msra.mxu0 0
      %428 = vmatprep.subr.bf16.mxu0 0
      %429 = vmatpush2.bf16.msra.mxu0 0
      %430 = vmatprep.subr.bf16.mxu0 0
      %431 = vmatpush2.bf16.msra.mxu0 0
      %432 = vmatprep.mubr.bf16.mxu0 0
      %433 = vmatmul.mubr.bf16.gmra.mxu0 %v388
      %v434 = vpop.f32.mrf.mxu0
      %v435 = vadd.f32 0.0, %v434
      %v436 = vpop.f32.mrf.mxu0
      %v437 = vadd.f32 0.0, %v436
      %v438 = vpop.f32.mrf.mxu0
      %v439 = vpop.f32.mrf.mxu0
      %440 = vdwg.mxu0
      %v441 = vmax.f32 %v435, 0.0
      %v442 = vmax.f32 %v437, 0.0
      %v444 = vcombine.high %v380, %v380
      %v446 = vpack.c.bf16 %v380, %v380
      %v447 = vpack.c.bf16 %v444, %v444
      %v449 = vand.u32 %v446, %v393
      %v452 = vand.u32 %v447, %v393
      %454 = vmatprep.subr.bf16.mxu0 0
      %455 = vmatpush1.bf16.msra.mxu0 0
      %456 = vmatprep.subr.bf16.mxu0 0
      %457 = vmatpush1.bf16.msra.mxu0 0
      %458 = vmatprep.subr.bf16.mxu0 0
      %459 = vmatpush1.bf16.msra.mxu0 0
      %460 = vmatprep.subr.bf16.mxu0 0
      %461 = vmatpush1.bf16.msra.mxu0 0
      %462 = vmatprep.subr.bf16.mxu0 0
      %463 = vmatpush1.bf16.msra.mxu0 0
      %464 = vmatprep.subr.bf16.mxu0 0
      %465 = vmatpush1.bf16.msra.mxu0 0
      %466 = vmatprep.subr.bf16.mxu0 0
      %467 = vmatpush1.bf16.msra.mxu0 0
      %468 = vmatprep.subr.bf16.mxu0 %v452
      %469 = vmatpush1.bf16.msra.mxu0 %v449
      %470 = vmatprep.subr.bf16.mxu0 0
      %471 = vmatpush2.bf16.msra.mxu0 0
      %472 = vmatprep.subr.bf16.mxu0 0
      %473 = vmatpush2.bf16.msra.mxu0 0
      %474 = vmatprep.subr.bf16.mxu0 0
      %475 = vmatpush2.bf16.msra.mxu0 0
      %476 = vmatprep.subr.bf16.mxu0 0
      %477 = vmatpush2.bf16.msra.mxu0 0
      %478 = vmatprep.subr.bf16.mxu0 0
      %479 = vmatpush2.bf16.msra.mxu0 0
      %480 = vmatprep.subr.bf16.mxu0 0
      %481 = vmatpush2.bf16.msra.mxu0 0
      %482 = vmatprep.subr.bf16.mxu0 0
      %483 = vmatpush2.bf16.msra.mxu0 0
      %484 = vmatprep.subr.bf16.mxu0 0
      %485 = vmatpush2.bf16.msra.mxu0 0
      %486 = vmatprep.mubr.bf16.mxu0 0
      %487 = vmatmul.mubr.bf16.gmra.mxu0 %v388
      %v488 = vpop.f32.mrf.mxu0
      %v489 = vadd.f32 0.0, %v488
      %v490 = vpop.f32.mrf.mxu0
      %v491 = vadd.f32 0.0, %v490
      %v492 = vpop.f32.mrf.mxu0
      %v493 = vpop.f32.mrf.mxu0
      %494 = vdwg.mxu0
      %v495 = vmax.f32 %v489, 0.0
      %v496 = vmax.f32 %v491, 0.0
      %v497 = vmul.f32 %v441, %v441
      %v498 = vmul.f32 %v442, %v442
      %v499 = vrot.slane %v497, 4
      %v500 = vadd.f32 %v497, %v499
      %v501 = vrot.slane %v500, 2
      %v502 = vadd.f32 %v500, %v501
      %v503 = vrot.slane %v502, 1
      %v504 = vadd.f32 %v502, %v503
      %v505 = vrot.slane %v498, 4
      %v506 = vadd.f32 %v498, %v505
      %v507 = vrot.slane %v506, 2
      %v508 = vadd.f32 %v506, %v507
      %v509 = vrot.slane %v508, 1
      %v510 = vadd.f32 %v508, %v509
      %v511 = vadd.f32 %v504, 1e-10
      %v512 = vadd.f32 %v510, 1e-10
      %v513 = vrsqrt.pop %v511
      %v514 = vrsqrt.pop %v512
      %v515 = vmul.f32 %v441, %v513
      %v516 = vmul.f32 %v442, %v514
      %v517 = vmul.f32 %v495, %v495
      %v518 = vmul.f32 %v496, %v496
      %v519 = vrot.slane %v517, 4
      %v520 = vadd.f32 %v517, %v519
      %v521 = vrot.slane %v520, 2
      %v522 = vadd.f32 %v520, %v521
      %v523 = vrot.slane %v522, 1
      %v524 = vadd.f32 %v522, %v523
      %v525 = vrot.slane %v518, 4
      %v526 = vadd.f32 %v518, %v525
      %v527 = vrot.slane %v526, 2
      %v528 = vadd.f32 %v526, %v527
      %v529 = vrot.slane %v528, 1
      %v530 = vadd.f32 %v528, %v529
      %v531 = vadd.f32 %v524, 1e-10
      %v532 = vadd.f32 %v530, 1e-10
      %v533 = vrsqrt.pop %v531
      %v534 = vrsqrt.pop %v532
      %v535 = vmul.f32 %v495, %v533
      %v536 = vmul.f32 %v496, %v534
      %v537 = vpack.c.bf16 %v515, %v515
      %v538 = vpack.c.bf16 %v516, %v516
      %v541 = vunpack.c.l.b16 %v537
      %v542 = vunpack.c.l.b16 %v538
      %v543 = vpack.c.b16 %v542, %v541
      %545 = vst [vmem:[%s351] sm:$0xff] %v543
      %v546 = vpack.c.bf16 %v535, %v535
      %v547 = vpack.c.bf16 %v536, %v536
      %v550 = vunpack.c.l.b16 %v546
      %v551 = vunpack.c.l.b16 %v547
      %v552 = vpack.c.b16 %v551, %v550
      %554 = vst [vmem:[%s361] sm:$0xff] %v552
      %v555 = vsub.f32 %v515, %v535
      %v556 = vsub.f32 %v516, %v536
      %v557 = vld [vmem:[%s366] sm:$0xff]
      %v558 = vmul.f32 %v555, %v555
      %v559 = vmul.f32 %v556, %v556
      %v560 = vadd.f32 %v558, %v559
      %v561 = vadd.f32 %v557, %v560
      %562 = vst [vmem:[%s366] sm:$0xff] %v561
      %v563 = vsub.f32 %v379, %v380
      %v564 = vld [vmem:[%s370] sm:$0x7]
      %v565 = vmul.f32 %v563, %v563
      %v567 = vrot.slane %v565, 4
      %v569 = vadd.f32 %v565, %v567
      %v570 = vadd.f32 %v564, %v569
      %571 = vst [vmem:[%s370] sm:$0x7] %v570
      %s572 = smul.u32 2, %s23
      %p573 = scmp.lt.s32.totalorder %s22, 1
      %s574 = scalar_select %p573, %s22, 1
      %p575 = scmp.lt.s32.totalorder %s572, 1
      %s576 = scalar_select %p575, %s572, 1
      %s577 = smul.addr %s574, 2
      %s578 = sadd.s32 %s576, %s577
      %s579 = smul.addr %s578, 4
      %s580 = scalar_lea.vmem %s3, %s579
      %s581 = smul.u32 2, %s23
      %p582 = scmp.lt.s32.totalorder %s22, 1
      %s583 = scalar_select %p582, %s22, 1
      %p584 = scmp.lt.s32.totalorder %s581, 1
      %s585 = scalar_select %p584, %s581, 1
      %s586 = smul.addr %s583, 2
      %s587 = sadd.s32 %s585, %s586
      %s588 = smul.addr %s587, 4
      %s589 = scalar_lea.vmem %s4, %s588
      %p590 = scmp.lt.s32.totalorder %s22, 1
      %s591 = scalar_select %p590, %s22, 1
      %s592 = smul.addr %s591, 8
      %s593 = scalar_lea.vmem %s5, %s592
      %p594 = scmp.lt.s32.totalorder %s22, 1
      %s595 = scalar_select %p594, %s22, 1
      %s596 = smul.addr %s595, 4
      %s597 = scalar_lea.vmem %s6, %s596
      // Predicated region
      $region37: #{resolution_loss.3} parent=31 // pred_check
        %p598 = pneg %p127
      $region38: #{resolution_loss.3} parent=31 // pred_check_branch
        %600 = sbr.rel (%p598) target = $region40
      $region39: #{resolution_loss.3} parent=31 // pred_region
        %s601 = smul.u32 2, %s23
      $region40: #{resolution_loss.3} parent=31 // pred_fallthru
        _
      // Predicated region
      $region41: #{resolution_loss.3} parent=31 // pred_check
        %p602 = pneg %p155
      $region42: #{resolution_loss.3} parent=31 // pred_check_branch
        %604 = sbr.rel (%p602) target = $region44
      $region43: #{resolution_loss.3} parent=31 // pred_region
        %s605 = smul.u32 2, %s23
      $region44: #{resolution_loss.3} parent=31 // pred_fallthru
        _
      // Predicated region
      $region45: #{resolution_loss.3} parent=31 // pred_check
        %p606 = pneg %p181
      $region46: #{resolution_loss.3} parent=31 // pred_check_branch
        %608 = sbr.rel (%p606) target = $region48
      $region47: #{resolution_loss.3} parent=31 // pred_region
        _
      $region48: #{resolution_loss.3} parent=31 // pred_fallthru
        _
      // Predicated region
      $region49: #{resolution_loss.3} parent=31 // pred_check
        %p609 = pneg %p207
      $region50: #{resolution_loss.3} parent=31 // pred_check_branch
        %611 = sbr.rel (%p609) target = $region52
      $region51: #{resolution_loss.3} parent=31 // pred_region
        _
      $region52: #{resolution_loss.3} parent=31 // pred_fallthru
        _
    $region32: #{resolution_loss.3} parent=5 // pred_fallthru
      _
    %p612 = scmp.le.s32.totalorder 2, %s13
    // Predicated region
    $region53: #{resolution_loss.3} parent=5 // pred_check
      %p613 = pneg %p612
    $region54: #{resolution_loss.3} parent=5 // pred_check_branch
      %615 = sbr.rel (%p613) target = $region56
    $region55: #{resolution_loss.3} parent=5 // pred_region
      %s616 = ssub.s32 %s13, 2
      // Predicated region
      $region57: #{resolution_loss.3} parent=55 // pred_check
        %p617 = pneg %p133
      $region58: #{resolution_loss.3} parent=55 // pred_check_branch
        %619 = sbr.rel (%p617) target = $region60
      $region59: #{resolution_loss.3} parent=55 // pred_region
        %s620 = smul.u32 2, %s25
        %p621 = scmp.lt.s32.totalorder %s24, 1
        %s622 = scalar_select %p621, %s24, 1
        %p623 = scmp.lt.s32.totalorder %s620, 1
        %s624 = scalar_select %p623, %s620, 1
        %s625 = smul.addr %s622, 2
        %s626 = sadd.s32 %s624, %s625
        %s627 = smul.addr %s626, 4
        %s628 = scalar_lea.vmem %s3, %s627
      $region60: #{resolution_loss.3} parent=55 // pred_fallthru
        _
      // Predicated region
      $region61: #{resolution_loss.3} parent=55 // pred_check
        %p629 = pneg %p161
      $region62: #{resolution_loss.3} parent=55 // pred_check_branch
        %631 = sbr.rel (%p629) target = $region64
      $region63: #{resolution_loss.3} parent=55 // pred_region
        %s632 = smul.u32 2, %s25
        %p633 = scmp.lt.s32.totalorder %s24, 1
        %s634 = scalar_select %p633, %s24, 1
        %p635 = scmp.lt.s32.totalorder %s632, 1
        %s636 = scalar_select %p635, %s632, 1
        %s637 = smul.addr %s634, 2
        %s638 = sadd.s32 %s636, %s637
        %s639 = smul.addr %s638, 4
        %s640 = scalar_lea.vmem %s4, %s639
      $region64: #{resolution_loss.3} parent=55 // pred_fallthru
        _
      // Predicated region
      $region65: #{resolution_loss.3} parent=55 // pred_check
        %p641 = pneg %p187
      $region66: #{resolution_loss.3} parent=55 // pred_check_branch
        %643 = sbr.rel (%p641) target = $region68
      $region67: #{resolution_loss.3} parent=55 // pred_region
        %p644 = scmp.lt.s32.totalorder %s24, 1
        %s645 = scalar_select %p644, %s24, 1
        %s646 = smul.addr %s645, 8
        %s647 = scalar_lea.vmem %s5, %s646
      $region68: #{resolution_loss.3} parent=55 // pred_fallthru
        _
      // Predicated region
      $region69: #{resolution_loss.3} parent=55 // pred_check
        %p648 = pneg %p213
      $region70: #{resolution_loss.3} parent=55 // pred_check_branch
        %650 = sbr.rel (%p648) target = $region72
      $region71: #{resolution_loss.3} parent=55 // pred_region
        %p651 = scmp.lt.s32.totalorder %s24, 1
        %s652 = scalar_select %p651, %s24, 1
        %s653 = smul.addr %s652, 4
        %s654 = scalar_lea.vmem %s6, %s653
      $region72: #{resolution_loss.3} parent=55 // pred_fallthru
        _
    $region56: #{resolution_loss.3} parent=5 // pred_fallthru
      _
  $region6: #{resolution_loss.3} parent=0 // loop_footer
    %s17 = sadd.s32 1, %s13
  $region7: #{resolution_loss.3} parent=0 // loop_footer_branch
    %12 = sbr.rel target = $region3
  $region8: #{resolution_loss.3} parent=0 // loop_exit
    _

// kernel: resolution_loss.5
$region0: #{resolution_loss.5}
  #allocation0 [shape = 'u32[]', space=smem, size = 0x4, offset = 0x4, fixed_abs, tag = 'smem constant byte address 0x4 - core index']
  #allocation1 [shape = 'u32[144,128]{1,0:T(1,128)}', space=vmem, size = 0x12000, scoped, tag = 'internal scratch']
  %s0 = inlined_call_operand.vmem [shape: bf16[2,16,16], index: 0, kind: input, shape index: {}]
  %s1 = inlined_call_operand.vmem [shape: bf16[2,16,16], index: 1, kind: input, shape index: {}]
  %s2 = inlined_call_operand.vmem [shape: bf16[32,16], index: 2, kind: input, shape index: {}]
  %s3 = inlined_call_operand.vmem [shape: f32[2,8,16], index: 3, kind: output, shape index: {}]
  %s4 = sld [smem:[#allocation0]]
  $region49: #{resolution_loss.5} parent=0
    _
  %s6 = ssub.s32 1, %s4
  %s7 = scalar_select 0, %s6, %s4
  loop: start=0, step=1, limit=4
  $region2: #{resolution_loss.5} parent=0 // loop_pre_header
    _
  $region3: #{resolution_loss.5} parent=0 // loop_header
    %s9 = sphi 0, %s13
    %p10 = scmp.ge.s32.totalorder %s9, 4
    %s16 = sphi 0, %s28
    %s17 = sphi 0, %s24
    %s18 = sphi 0, %s16
    %s19 = sphi 0, %s17
    %s20 = sphi 0, %s18
    %s21 = sphi 0, %s19
    %s33 = sphi 0, %s35
    %s36 = sphi 0, %s33
    %s37 = sphi 0, %s36
    %s53 = sphi 0, %s37
    %s61 = sphi 0, %s63
    %s64 = sphi 0, %s61
    %s65 = sphi 0, %s64
    %s81 = sphi 0, %s65
    %s85 = sphi 0, %s85
    %s87 = sphi 0, %s85
    %s88 = sphi 0, %s87
    %s102 = sphi 0, %s88
    %s108 = sphi 0, %s110
    %s111 = sphi 0, %s108
    %s112 = sphi 0, %s111
    %s128 = sphi 0, %s112
  $region4: #{resolution_loss.5} parent=0 // loop_header_branch
    %12 = sbr.rel (%p10) target = $region8
  $region5: #{resolution_loss.5} parent=0 // loop_body
    %s14 = ssub.s32 %s9, 1
    %s15 = ssub.s32 %s9, 2
    %s22 = sadd.s32 1, %s17
    %p23 = scmp.ge.s32.totalorder %s22, 1
    %s24 = scalar_select %p23, 0, %s22
    %s25 = sadd.s32 1, %s16
    %s26 = scalar_select %p23, %s25, %s16
    %p27 = scmp.ge.s32.totalorder %s26, 2
    %s28 = scalar_select %p27, 0, %s26
    %s29 = ssub.s32 %s16, %s28
    %s30 = ssub.s32 %s17, %s24
    %s31 = sor.u32 %s29, %s30
    %p32 = scmp.eq.s32.totalorder %s31, 0
    %s34 = sadd.s32 %s33, 1
    %s35 = scalar_select %p32, %s33, %s34
    %p38 = pneg %p32
    %p39 = scmp.eq.s32.totalorder %s9, 1
    %p40 = por %p38, %p39
    %p41 = scmp.ne.s32.totalorder %s33, %s36
    %p42 = scmp.eq.s32.totalorder %s9, 0
    %p43 = por %p41, %p42
    %p44 = scmp.ne.s32.totalorder %s33, %s36
    %p45 = scmp.eq.s32.totalorder %s14, 1
    %p46 = por %p44, %p45
    %p47 = scmp.ne.s32.totalorder %s36, %s37
    %p48 = scmp.eq.s32.totalorder %s14, 0
    %p49 = por %p47, %p48
    %p50 = scmp.ne.s32.totalorder %s36, %s37
    %p51 = scmp.eq.s32.totalorder %s15, 1
    %p52 = por %p50, %p51
    %p54 = scmp.ne.s32.totalorder %s37, %s53
    %p55 = scmp.eq.s32.totalorder %s15, 0
    %p56 = por %p54, %p55
    %s57 = ssub.s32 %s16, %s28
    %s58 = ssub.s32 %s17, %s24
    %s59 = sor.u32 %s57, %s58
    %p60 = scmp.eq.s32.totalorder %s59, 0
    %s62 = sadd.s32 %s61, 1
    %s63 = scalar_select %p60, %s61, %s62
    %p66 = pneg %p60
    %p67 = scmp.eq.s32.totalorder %s9, 1
    %p68 = por %p66, %p67
    %p69 = scmp.ne.s32.totalorder %s61, %s64
    %p70 = scmp.eq.s32.totalorder %s9, 0
    %p71 = por %p69, %p70
    %p72 = scmp.ne.s32.totalorder %s61, %s64
    %p73 = scmp.eq.s32.totalorder %s14, 1
    %p74 = por %p72, %p73
    %p75 = scmp.ne.s32.totalorder %s64, %s65
    %p76 = scmp.eq.s32.totalorder %s14, 0
    %p77 = por %p75, %p76
    %p78 = scmp.ne.s32.totalorder %s64, %s65
    %p79 = scmp.eq.s32.totalorder %s15, 1
    %p80 = por %p78, %p79
    %p82 = scmp.ne.s32.totalorder %s65, %s81
    %p83 = scmp.eq.s32.totalorder %s15, 0
    %p84 = por %p82, %p83
    %s86 = sadd.s32 %s85, 1
    %p89 = scmp.eq.s32.totalorder %s9, 1
    %p90 = scmp.ne.s32.totalorder %s85, %s87
    %p91 = scmp.eq.s32.totalorder %s9, 0
    %p92 = por %p90, %p91
    %p93 = scmp.ne.s32.totalorder %s85, %s87
    %p94 = scmp.eq.s32.totalorder %s14, 1
    %p95 = por %p93, %p94
    %p96 = scmp.ne.s32.totalorder %s87, %s88
    %p97 = scmp.eq.s32.totalorder %s14, 0
    %p98 = por %p96, %p97
    %p99 = scmp.ne.s32.totalorder %s87, %s88
    %p100 = scmp.eq.s32.totalorder %s15, 1
    %p101 = por %p99, %p100
    %p103 = scmp.ne.s32.totalorder %s88, %s102
    %p104 = scmp.eq.s32.totalorder %s15, 0
    %p105 = por %p103, %p104
    %s106 = ssub.s32 %s16, %s28
    %p107 = scmp.eq.s32.totalorder %s106, 0
    %s109 = sadd.s32 %s108, 1
    %s110 = scalar_select %p107, %s108, %s109
    %p113 = pneg %p107
    %p114 = scmp.eq.s32.totalorder %s9, 1
    %p115 = por %p113, %p114
    %p116 = scmp.ne.s32.totalorder %s108, %s111
    %p117 = scmp.eq.s32.totalorder %s9, 0
    %p118 = por %p116, %p117
    %p119 = scmp.ne.s32.totalorder %s108, %s111
    %p120 = scmp.eq.s32.totalorder %s14, 1
    %p121 = por %p119, %p120
    %p122 = scmp.ne.s32.totalorder %s111, %s112
    %p123 = scmp.eq.s32.totalorder %s14, 0
    %p124 = por %p122, %p123
    %p125 = scmp.ne.s32.totalorder %s111, %s112
    %p126 = scmp.eq.s32.totalorder %s15, 1
    %p127 = por %p125, %p126
    %p129 = scmp.ne.s32.totalorder %s112, %s128
    %p130 = scmp.eq.s32.totalorder %s15, 0
    %p131 = por %p129, %p130
    %p132 = scmp.le.s32.totalorder 1, %s9
    %p133 = scmp.lt.s32.totalorder %s9, 3
    %p134 = pnand %p132, %p133
    %p135 = pneg %p134
    // Predicated region
    $region9: #{resolution_loss.5} parent=5 // pred_check
      _
    $region10: #{resolution_loss.5} parent=5 // pred_check_branch
      %137 = sbr.rel (%p134) target = $region12
    $region11: #{resolution_loss.5} parent=5 // pred_region
      %s138 = ssub.s32 %s9, 1
      // Predicated region
      $region13: #{resolution_loss.5} parent=11 // pred_check
        %p139 = pneg %p98
      $region14: #{resolution_loss.5} parent=11 // pred_check_branch
        %141 = sbr.rel (%p139) target = $region16
      $region15: #{resolution_loss.5} parent=11 // pred_region
        _
      $region16: #{resolution_loss.5} parent=11 // pred_fallthru
        _
    $region12: #{resolution_loss.5} parent=5 // pred_fallthru
      _
    %p142 = scmp.lt.s32.totalorder %s9, 2
    // Predicated region
    $region17: #{resolution_loss.5} parent=5 // pred_check
      %p143 = pneg %p142
    $region18: #{resolution_loss.5} parent=5 // pred_check_branch
      %145 = sbr.rel (%p143) target = $region20
    $region19: #{resolution_loss.5} parent=5 // pred_region
      // Predicated region
      $region21: #{resolution_loss.5} parent=19 // pred_check
        %p146 = pneg %p43
      $region22: #{resolution_loss.5} parent=19 // pred_check_branch
        %148 = sbr.rel (%p146) target = $region24
      $region23: #{resolution_loss.5} parent=19 // pred_region
        %p149 = scmp.lt.s32.totalorder %s16, 1
        %s150 = scalar_select %p149, %s16, 1
        %p151 = scmp.lt.s32.totalorder %s17, 0
        %s152 = scalar_select %p151, %s17, 0
        %s153 = smul.addr %s150, 2
        %s154 = sadd.s32 %s152, %s153
        %s155 = smul.addr %s154, 4
        %s156 = scalar_lea.vmem %s0, %s155
      $region24: #{resolution_loss.5} parent=19 // pred_fallthru
        _
      // Predicated region
      $region25: #{resolution_loss.5} parent=19 // pred_check
        %p157 = pneg %p71
      $region26: #{resolution_loss.5} parent=19 // pred_check_branch
        %159 = sbr.rel (%p157) target = $region28
      $region27: #{resolution_loss.5} parent=19 // pred_region
        %p160 = scmp.lt.s32.totalorder %s16, 1
        %s161 = scalar_select %p160, %s16, 1
        %p162 = scmp.lt.s32.totalorder %s17, 0
        %s163 = scalar_select %p162, %s17, 0
        %s164 = smul.addr %s161, 2
        %s165 = sadd.s32 %s163, %s164
        %s166 = smul.addr %s165, 4
        %s167 = scalar_lea.vmem %s1, %s166
      $region28: #{resolution_loss.5} parent=19 // pred_fallthru
        _
    $region20: #{resolution_loss.5} parent=5 // pred_fallthru
      _
    %p168 = scmp.le.s32.totalorder 1, %s9
    %p169 = scmp.lt.s32.totalorder %s9, 3
    %p170 = pnand %p168, %p169
    %p171 = pneg %p170
    // Predicated region
    $region29: #{resolution_loss.5} parent=5 // pred_check
      _
    $region30: #{resolution_loss.5} parent=5 // pred_check_branch
      %173 = sbr.rel (%p170) target = $region32
    $region31: #{resolution_loss.5} parent=5 // pred_region
      %s174 = ssub.s32 %s9, 1
      %p175 = scmp.lt.s32.totalorder %s18, 1
      %s176 = scalar_select %p175, %s18, 1
      %p177 = scmp.lt.s32.totalorder %s19, 0
      %s178 = scalar_select %p177, %s19, 0
      %s179 = smul.addr %s176, 2
      %s180 = sadd.s32 %s178, %s179
      %s181 = smul.addr %s180, 4
      %s182 = scalar_lea.vmem %s0, %s181
      %p183 = pneg %p49
      %p184 = pneg %p46
      %p185 = scmp.lt.s32.totalorder %s18, 1
      %s186 = scalar_select %p185, %s18, 1
      %p187 = scmp.lt.s32.totalorder %s19, 0
      %s188 = scalar_select %p187, %s19, 0
      %s189 = smul.addr %s186, 2
      %s190 = sadd.s32 %s188, %s189
      %s191 = smul.addr %s190, 4
      %s192 = scalar_lea.vmem %s1, %s191
      %p193 = pneg %p77
      %p194 = pneg %p74
      %p195 = pneg %p98
      %p196 = pneg %p95
      %p197 = pneg %p124
      %p198 = pneg %p121
      %p199 = scmp.lt.s32.totalorder %s18, 1
      %s200 = scalar_select %p199, %s18, 1
      %s201 = smul.addr %s200, 8
      %s202 = scalar_lea.vmem %s3, %s201
      %p203 = scmp.lt.s32.totalorder %s18, 1
      %s204 = scalar_select %p203, %s18, 1
      %p205 = scmp.lt.s32.totalorder %s19, 0
      %s206 = scalar_select %p205, %s19, 0
      %s207 = smul.addr %s204, 2
      %s208 = sadd.s32 %s206, %s207
      %s209 = smul.addr %s208, 4
      %s210 = scalar_lea.vmem %s0, %s209
      %p211 = scmp.lt.s32.totalorder %s18, 1
      %s212 = scalar_select %p211, %s18, 1
      %p213 = scmp.lt.s32.totalorder %s19, 0
      %s214 = scalar_select %p213, %s19, 0
      %s215 = smul.addr %s212, 2
      %s216 = sadd.s32 %s214, %s215
      %s217 = smul.addr %s216, 4
      %s218 = scalar_lea.vmem %s1, %s217
      %p219 = scmp.lt.s32.totalorder %s18, 1
      %s220 = scalar_select %p219, %s18, 1
      %s221 = smul.addr %s220, 8
      %s222 = scalar_lea.vmem %s3, %s221
      %p224 = scmp.eq.s32.totalorder %s19, 0
      // Predicated region
      $region33: #{resolution_loss.5} parent=31 // pred_check
        %p225 = pneg %p224
      $region34: #{resolution_loss.5} parent=31 // pred_check_branch
        %227 = sbr.rel (%p225) target = $region36
      $region35: #{resolution_loss.5} parent=31 // pred_region
        %vm228 = vcmask 130048
        %229 = vst.msk [vmem:[%s222] sm:$0xff] %vm228, 0.0
      $region36: #{resolution_loss.5} parent=31 // pred_fallthru
        _
      %v230 = vld [vmem:[%s2] sm:$0xf]
      %v231 = vld [vmem:[%s2 + $0x4] sm:$0xf]
      %v232 = vld [vmem:[%s2 + $0x8] sm:$0xf]
      %v233 = vld [vmem:[%s2 + $0xc] sm:$0xf]
      %v234 = vld [vmem:[%s210] sm:$0xf]
      %v235 = vld [vmem:[%s210 + $0x4] sm:$0xf]
      %v236 = vld [vmem:[%s218] sm:$0xf]
      %v237 = vld [vmem:[%s218 + $0x4] sm:$0xf]
      %v242 = vunpack.c.l.b16 %v230
      %v243 = vunpack.c.l.b16 %v231
      %v244 = vunpack.c.l.b16 %v232
      %v245 = vunpack.c.l.b16 %v233
      %v246 = vpack.c.b16 %v243, %v242
      %v247 = vpack.c.b16 %v245, %v244
      %v250 = vunpack.c.l.b16 %v234
      %v251 = vunpack.c.l.b16 %v235
      %v252 = vpack.c.b16 %v251, %v250
      %vm254 = vcmask 130048
      %v256 = vsel %vm254, %v246, 0
      %v259 = vsel %vm254, %v247, 0
      %261 = vmatprep.subr.bf16.mxu0 0
      %262 = vmatpush1.bf16.msra.mxu0 0
      %263 = vmatprep.subr.bf16.mxu0 0
      %264 = vmatpush1.bf16.msra.mxu0 0
      %265 = vmatprep.subr.bf16.mxu0 0
      %266 = vmatpush1.bf16.msra.mxu0 0
      %267 = vmatprep.subr.bf16.mxu0 0
      %268 = vmatpush1.bf16.msra.mxu0 0
      %269 = vmatprep.subr.bf16.mxu0 0
      %270 = vmatpush1.bf16.msra.mxu0 0
      %271 = vmatprep.subr.bf16.mxu0 0
      %272 = vmatpush1.bf16.msra.mxu0 0
      %273 = vmatprep.subr.bf16.mxu0 0
      %274 = vmatpush1.bf16.msra.mxu0 0
      %275 = vmatprep.subr.bf16.mxu0 0
      %276 = vmatpush1.bf16.msra.mxu0 %v252
      %277 = vmatprep.subr.bf16.mxu0 0
      %278 = vmatpush2.bf16.msra.mxu0 0
      %279 = vmatprep.subr.bf16.mxu0 0
      %280 = vmatpush2.bf16.msra.mxu0 0
      %281 = vmatprep.subr.bf16.mxu0 0
      %282 = vmatpush2.bf16.msra.mxu0 0
      %283 = vmatprep.subr.bf16.mxu0 0
      %284 = vmatpush2.bf16.msra.mxu0 0
      %285 = vmatprep.subr.bf16.mxu0 0
      %286 = vmatpush2.bf16.msra.mxu0 0
      %287 = vmatprep.subr.bf16.mxu0 0
      %288 = vmatpush2.bf16.msra.mxu0 0
      %289 = vmatprep.subr.bf16.mxu0 0
      %290 = vmatpush2.bf16.msra.mxu0 0
      %291 = vmatprep.subr.bf16.mxu0 0
      %292 = vmatpush2.bf16.msra.mxu0 0
      %293 = vmatprep.mubr.bf16.mxu0 0
      %294 = vmatmul.mubr.bf16.gmra.mxu0 %v256
      %v295 = vpop.f32.mrf.mxu0
      %v296 = vadd.f32 0.0, %v295
      %v297 = vpop.f32.mrf.mxu0
      %v298 = vpop.f32.mrf.mxu0
      %v299 = vadd.f32 0.0, %v298
      %v300 = vpop.f32.mrf.mxu0
      %301 = vmatprep.mubr.bf16.mxu0 0
      %302 = vmatmul.mubr.bf16.gmra.mxu0 %v259
      %v303 = vpop.f32.mrf.mxu0
      %v304 = vadd.f32 0.0, %v303
      %v305 = vpop.f32.mrf.mxu0
      %v306 = vpop.f32.mrf.mxu0
      %v307 = vadd.f32 0.0, %v306
      %v308 = vpop.f32.mrf.mxu0
      %309 = vdwg.mxu0
      %v310 = vmax.f32 %v296, 0.0
      %v311 = vmax.f32 %v299, 0.0
      %v312 = vmax.f32 %v304, 0.0
      %v313 = vmax.f32 %v307, 0.0
      %v316 = vunpack.c.l.b16 %v236
      %v317 = vunpack.c.l.b16 %v237
      %v318 = vpack.c.b16 %v317, %v316
      %320 = vmatprep.subr.bf16.mxu0 0
      %321 = vmatpush1.bf16.msra.mxu0 0
      %322 = vmatprep.subr.bf16.mxu0 0
      %323 = vmatpush1.bf16.msra.mxu0 0
      %324 = vmatprep.subr.bf16.mxu0 0
      %325 = vmatpush1.bf16.msra.mxu0 0
      %326 = vmatprep.subr.bf16.mxu0 0
      %327 = vmatpush1.bf16.msra.mxu0 0
      %328 = vmatprep.subr.bf16.mxu0 0
      %329 = vmatpush1.bf16.msra.mxu0 0
      %330 = vmatprep.subr.bf16.mxu0 0
      %331 = vmatpush1.bf16.msra.mxu0 0
      %332 = vmatprep.subr.bf16.mxu0 0
      %333 = vmatpush1.bf16.msra.mxu0 0
      %334 = vmatprep.subr.bf16.mxu0 0
      %335 = vmatpush1.bf16.msra.mxu0 %v318
      %336 = vmatprep.subr.bf16.mxu0 0
      %337 = vmatpush2.bf16.msra.mxu0 0
      %338 = vmatprep.subr.bf16.mxu0 0
      %339 = vmatpush2.bf16.msra.mxu0 0
      %340 = vmatprep.subr.bf16.mxu0 0
      %341 = vmatpush2.bf16.msra.mxu0 0
      %342 = vmatprep.subr.bf16.mxu0 0
      %343 = vmatpush2.bf16.msra.mxu0 0
      %344 = vmatprep.subr.bf16.mxu0 0
      %345 = vmatpush2.bf16.msra.mxu0 0
      %346 = vmatprep.subr.bf16.mxu0 0
      %347 = vmatpush2.bf16.msra.mxu0 0
      %348 = vmatprep.subr.bf16.mxu0 0
      %349 = vmatpush2.bf16.msra.mxu0 0
      %350 = vmatprep.subr.bf16.mxu0 0
      %351 = vmatpush2.bf16.msra.mxu0 0
      %352 = vmatprep.mubr.bf16.mxu0 0
      %353 = vmatmul.mubr.bf16.gmra.mxu0 %v256
      %v354 = vpop.f32.mrf.mxu0
      %v355 = vadd.f32 0.0, %v354
      %v356 = vpop.f32.mrf.mxu0
      %v357 = vpop.f32.mrf.mxu0
      %v358 = vadd.f32 0.0, %v357
      %v359 = vpop.f32.mrf.mxu0
      %360 = vmatprep.mubr.bf16.mxu0 0
      %361 = vmatmul.mubr.bf16.gmra.mxu0 %v259
      %v362 = vpop.f32.mrf.mxu0
      %v363 = vadd.f32 0.0, %v362
      %v364 = vpop.f32.mrf.mxu0
      %v365 = vpop.f32.mrf.mxu0
      %v366 = vadd.f32 0.0, %v365
      %v367 = vpop.f32.mrf.mxu0
      %368 = vdwg.mxu0
      %v369 = vmax.f32 %v355, 0.0
      %v370 = vmax.f32 %v358, 0.0
      %v371 = vmax.f32 %v363, 0.0
      %v372 = vmax.f32 %v366, 0.0
      %v373 = vmul.f32 %v310, %v310
      %v374 = vmul.f32 %v311, %v311
      %v375 = vmul.f32 %v312, %v312
      %v376 = vmul.f32 %v313, %v313
      %v377 = vsel %vm254, %v373, 0.0
      %v378 = vsel %vm254, %v374, 0.0
      %v379 = vadd.f32 %v377, %v378
      %v380 = vsel %vm254, %v375, 0.0
      %v381 = vadd.f32 %v379, %v380
      %v382 = vsel %vm254, %v376, 0.0
      %v383 = vadd.f32 %v381, %v382
      %v384 = vrot.slane %v383, 4
      %v385 = vadd.f32 %v383, %v384
      %v386 = vrot.slane %v385, 2
      %v387 = vadd.f32 %v385, %v386
      %v388 = vrot.slane %v387, 1
      %v389 = vadd.f32 %v387, %v388
      %v390 = vadd.f32 %v389, 1e-10
      %v391 = vrsqrt.pop %v390
      %v392 = vmul.f32 %v310, %v391
      %v393 = vmul.f32 %v311, %v391
      %v394 = vmul.f32 %v312, %v391
      %v395 = vmul.f32 %v313, %v391
      %v396 = vmul.f32 %v369, %v369
      %v397 = vmul.f32 %v370, %v370
      %v398 = vmul.f32 %v371, %v371
      %v399 = vmul.f32 %v372, %v372
      %v400 = vsel %vm254, %v396, 0.0
      %v401 = vsel %vm254, %v397, 0.0
      %v402 = vadd.f32 %v400, %v401
      %v403 = vsel %vm254, %v398, 0.0
      %v404 = vadd.f32 %v402, %v403
      %v405 = vsel %vm254, %v399, 0.0
      %v406 = vadd.f32 %v404, %v405
      %v407 = vrot.slane %v406, 4
      %v408 = vadd.f32 %v406, %v407
      %v409 = vrot.slane %v408, 2
      %v410 = vadd.f32 %v408, %v409
      %v411 = vrot.slane %v410, 1
      %v412 = vadd.f32 %v410, %v411
      %v413 = vadd.f32 %v412, 1e-10
      %v414 = vrsqrt.pop %v413
      %v415 = vmul.f32 %v369, %v414
      %v416 = vmul.f32 %v370, %v414
      %v417 = vmul.f32 %v371, %v414
      %v418 = vmul.f32 %v372, %v414
      %v419 = vsub.f32 %v392, %v415
      %v420 = vsub.f32 %v393, %v416
      %v421 = vsub.f32 %v394, %v417
      %v422 = vsub.f32 %v395, %v418
      %v423 = vld [vmem:[%s222] sm:$0xff]
      %v424 = vmul.f32 %v419, %v419
      %v425 = vmul.f32 %v420, %v420
      %v426 = vmul.f32 %v421, %v421
      %v427 = vmul.f32 %v422, %v422
      %v428 = vadd.f32 %v424, %v425
      %v429 = vadd.f32 %v428, %v426
      %v430 = vadd.f32 %v429, %v427
      %v431 = vadd.f32 %v423, %v430
      %432 = vst.msk [vmem:[%s222] sm:$0xff] %vm254, %v431
      %p433 = scmp.lt.s32.totalorder %s18, 1
      %s434 = scalar_select %p433, %s18, 1
      %s435 = smul.addr %s434, 8
      %s436 = scalar_lea.vmem %s3, %s435
      // Predicated region
      $region37: #{resolution_loss.5} parent=31 // pred_check
        %p437 = pneg %p121
      $region38: #{resolution_loss.5} parent=31 // pred_check_branch
        %439 = sbr.rel (%p437) target = $region40
      $region39: #{resolution_loss.5} parent=31 // pred_region
        _
      $region40: #{resolution_loss.5} parent=31 // pred_fallthru
        _
    $region32: #{resolution_loss.5} parent=5 // pred_fallthru
      _
    %p440 = scmp.le.s32.totalorder 2, %s9
    // Predicated region
    $region41: #{resolution_loss.5} parent=5 // pred_check
      %p441 = pneg %p440
    $region42: #{resolution_loss.5} parent=5 // pred_check_branch
      %443 = sbr.rel (%p441) target = $region44
    $region43: #{resolution_loss.5} parent=5 // pred_region
      %s444 = ssub.s32 %s9, 2
      // Predicated region
      $region45: #{resolution_loss.5} parent=43 // pred_check
        %p445 = pneg %p127
      $region46: #{resolution_loss.5} parent=43 // pred_check_branch
        %447 = sbr.rel (%p445) target = $region48
      $region47: #{resolution_loss.5} parent=43 // pred_region
        %p448 = scmp.lt.s32.totalorder %s20, 1
        %s449 = scalar_select %p448, %s20, 1
        %s450 = smul.addr %s449, 8
        %s451 = scalar_lea.vmem %s3, %s450
      $region48: #{resolution_loss.5} parent=43 // pred_fallthru
        _
    $region44: #{resolution_loss.5} parent=5 // pred_fallthru
      _
  $region6: #{resolution_loss.5} parent=0 // loop_footer
    %s13 = sadd.s32 1, %s9
  $region7: #{resolution_loss.5} parent=0 // loop_footer_branch
    %8 = sbr.rel target = $region3
  $region8: #{resolution_loss.5} parent=0 // loop_exit
    _

</llo_original>
